<compile_context>
chip_gen: v7x
topology: tpu7x:2x2x1
jax: 0.10.0
libtpu: 0.0.40
codegen_flags: <defaults>
</compile_context>

<pallas_src>
import functools

import jax
import jax.numpy as jnp
import numpy as np
from jax import lax
from jax.experimental import pallas as pl
from jax.experimental.pallas import tpu as pltpu

LANES = 128


def _rollout_kernel(x0_ref, p_ref, traj_ref, *, NX, NU, H, T, Bg,
                    off_wf, off_w1u, off_w2, off_bt, off_b1, off_b2):
    # Static slices of the packed parameter buffer (no runtime cost).
    wf = p_ref[off_wf:off_wf + NX, 0:H + NU]       # [NX, H+NU] = [W1x | Wu]
    w1u = p_ref[off_w1u:off_w1u + NU, 0:H]         # [NU, H]
    w2 = p_ref[off_w2:off_w2 + H, 0:NX]            # [H, NX]
    # Constant broadcasts hoisted out of the unrolled time loop.
    b1 = jnp.broadcast_to(p_ref[off_b1:off_b1 + 1, 0:H], (Bg, H))
    b2 = jnp.broadcast_to(p_ref[off_b2:off_b2 + 1, 0:NX], (Bg, NX))

    x0 = x0_ref[...].astype(jnp.float32)
    traj_ref[0] = x0                               # traj[0] = x0[None]

    def body(i, x):
        # Precomputed controller bias for step i: bu + t_i * ct  -> [1, NU]
        bt = p_ref[pl.ds(off_bt + i, 1), 0:NU]
        # One fused x-side matmul: x @ [W1x | Wu] -> [Bg, H+NU]
        xw = jnp.dot(x, wf, preferred_element_type=jnp.float32)
        # u = tanh(x @ Wu + bu + t*ct)
        u = jnp.tanh(xw[:, H:H + NU] + bt)
        # model(cat([x, u], -1)):  xu @ W1 == x @ W1x + u @ W1u  (exact split)
        h = jnp.tanh(xw[:, 0:H]
                     + jnp.dot(u, w1u, preferred_element_type=jnp.float32)
                     + b1)
        nxt = jnp.dot(h, w2, preferred_element_type=jnp.float32) + b2 + x  # residual=True
        traj_ref[i + 1] = nxt
        return nxt

    lax.fori_loop(0, T - 1, body, x0, unroll=True)


def neural_model_rollout(x0, t_span, params, *, num_groups=None):
    """Returns traj [T, B, NX], T = len(t_span)."""
    B, NX = x0.shape
    T = int(t_span.shape[0])
    wu, bu, ct, w1x, w1u, b1, w2, b2 = params
    NU = wu.shape[1]
    H = w1x.shape[1]
    assert H + NU <= LANES, "packed layout assumes each weight fits in 128 lanes"

    # Independent batch rows -> shard across a parallel grid axis (>=8 rows/group).
    if num_groups is None:
        num_groups = max(1, B // 8)
    while B % num_groups != 0:
        num_groups -= 1
    Bg = B // num_groups

    f32 = jnp.float32
    # Fused x-side weight, H part first so the wide slice is lane-0 aligned.
    wf = jnp.concatenate([w1x, wu], axis=1).astype(f32)          # [NX, H+NU]
    # Precomputed time-dependent controller bias (row T-1 unused).
    bias_t = (bu + t_span[:, None] * ct).astype(f32)             # [T, NU]

    def pad_lanes(a):
        a = a.astype(f32)
        return jnp.pad(a, ((0, 0), (0, LANES - a.shape[1])))

    # Static row offsets inside the packed buffer.
    off_wf = 0
    off_w1u = off_wf + NX
    off_w2 = off_w1u + NU
    off_bt = off_w2 + H            # 8-aligned tile holding bias_t
    off_b1 = off_bt + T
    off_b2 = off_b1 + 1
    rows = off_b2 + 1
    rpad = ((rows + 7) // 8) * 8

    packed = jnp.concatenate(
        [pad_lanes(wf), pad_lanes(w1u), pad_lanes(w2),
         pad_lanes(bias_t), pad_lanes(b1), pad_lanes(b2)], axis=0)
    packed = jnp.pad(packed, ((0, rpad - rows), (0, 0)))         # [rpad, 128]

    kernel = functools.partial(
        _rollout_kernel, NX=NX, NU=NU, H=H, T=T, Bg=Bg,
        off_wf=off_wf, off_w1u=off_w1u, off_w2=off_w2,
        off_bt=off_bt, off_b1=off_b1, off_b2=off_b2)

    return pl.pallas_call(
        kernel,
        out_shape=jax.ShapeDtypeStruct((T, B, NX), f32),
        grid_spec=pltpu.PrefetchScalarGridSpec(
            num_scalar_prefetch=0,
            grid=(num_groups,),
            in_specs=[
                pl.BlockSpec((Bg, NX), lambda g: (g, 0)),        # x0 group slab
                pl.BlockSpec((rpad, LANES), lambda g: (0, 0)),   # packed params (resident)
            ],
            out_specs=pl.BlockSpec((T, Bg, NX), lambda g: (0, g, 0)),
        ),
        compiler_params=pltpu.CompilerParams(
            dimension_semantics=("parallel",)),
    )(x0.astype(f32), packed)


def reference_rollout(x0, t_span, params):
    """Pure-JAX reference mirroring the PyTorch forward loop (full-precision matmuls)."""
    wu, bu, ct, w1x, w1u, b1, w2, b2 = params
    HI = lax.Precision.HIGHEST
    w1 = jnp.concatenate([w1x, w1u], axis=0)
    xs = [x0[None]]
    xt = x0
    for i in range(t_span.shape[0] - 1):
        t = t_span[i]
        u = jnp.tanh(jnp.dot(xt, wu, precision=HI) + bu + t * ct)
        xu = jnp.concatenate([xt, u], axis=-1)
        nxt = (jnp.dot(jnp.tanh(jnp.dot(xu, w1, precision=HI) + b1), w2, precision=HI)
               + b2 + xt)
        xs.append(nxt[None])
        xt = nxt
    return jnp.concatenate(xs, axis=0)


if __name__ == "__main__":
    # 2 rollout groups of 8 batch rows each (grid axis "parallel" -> both v7x TCs).
    B, NX, NU, H, T = 16, 32, 16, 64, 8

    key = jax.random.PRNGKey(0)
    k = jax.random.split(key, 10)
    x0 = jax.random.normal(k[0], (B, NX), dtype=jnp.float32)
    t_span = jnp.linspace(0.0, 1.0, T).astype(jnp.float32)

    scale = 0.1
    params = (
        scale * jax.random.normal(k[1], (NX, NU), dtype=jnp.float32),   # Wu
        scale * jax.random.normal(k[2], (1, NU), dtype=jnp.float32),    # bu
        scale * jax.random.normal(k[3], (1, NU), dtype=jnp.float32),    # ct (time coupling)
        scale * jax.random.normal(k[4], (NX, H), dtype=jnp.float32),    # W1 (x part)
        scale * jax.random.normal(k[5], (NU, H), dtype=jnp.float32),    # W1 (u part)
        scale * jax.random.normal(k[6], (1, H), dtype=jnp.float32),     # b1
        scale * jax.random.normal(k[7], (H, NX), dtype=jnp.float32),    # W2
        scale * jax.random.normal(k[8], (1, NX), dtype=jnp.float32),    # b2
    )

    traj = jax.block_until_ready(neural_model_rollout(x0, t_span, params))
    ref = reference_rollout(x0, t_span, params)

    assert traj.shape == (T, B, NX)
    np.testing.assert_allclose(np.asarray(traj), np.asarray(ref), rtol=5e-3, atol=5e-3)
    print("KERNEL_OK")
</pallas_src>

<mosaic_0001>
module attributes {stable_mosaic.version = 11 : i64} {
  func.func @_rollout_kernel(%arg0: i32, %arg1: memref<8x32xf32, #tpu.memory_space<vmem>>, %arg2: memref<128x128xf32, #tpu.memory_space<vmem>>, %arg3: memref<8x8x32xf32, #tpu.memory_space<vmem>>) attributes {dimension_semantics = [#tpu.dimension_semantics<parallel>], iteration_bounds = array<i64: 2>, scalar_prefetch = 0 : i64, scratch_operands = 0 : i64, tpu.core_type = #tpu.core_type<tc>, window_params = [{transform_indices = @transform_0, window_bounds = array<i64: 8, 32>}, {pipeline_mode = #tpu.pipeline_mode<synchronous>, transform_indices = @transform_1, window_bounds = array<i64: 128, 128>}, {transform_indices = @transform_2, window_bounds = array<i64: 8, 8, 32>}]} {
    %c0 = arith.constant 0 : index
    %c0_0 = arith.constant 0 : index
    %0 = vector.load %arg2[%c0, %c0_0] : memref<128x128xf32, #tpu.memory_space<vmem>>, vector<32x80xf32>
    %c32 = arith.constant 32 : index
    %c0_1 = arith.constant 0 : index
    %1 = vector.load %arg2[%c32, %c0_1] : memref<128x128xf32, #tpu.memory_space<vmem>>, vector<16x64xf32>
    %c48 = arith.constant 48 : index
    %c0_2 = arith.constant 0 : index
    %2 = vector.load %arg2[%c48, %c0_2] : memref<128x128xf32, #tpu.memory_space<vmem>>, vector<64x32xf32>
    %c120 = arith.constant 120 : index
    %c0_3 = arith.constant 0 : index
    %3 = vector.load %arg2[%c120, %c0_3] : memref<128x128xf32, #tpu.memory_space<vmem>>, vector<1x64xf32>
    %4 = vector.shape_cast %3 : vector<1x64xf32> to vector<1x64xf32>
    %5 = vector.broadcast %4 : vector<1x64xf32> to vector<8x64xf32>
    %c121 = arith.constant 121 : index
    %c0_4 = arith.constant 0 : index
    %6 = vector.load %arg2[%c121, %c0_4] : memref<128x128xf32, #tpu.memory_space<vmem>>, vector<1x32xf32>
    %7 = vector.shape_cast %6 : vector<1x32xf32> to vector<1x32xf32>
    %8 = vector.broadcast %7 : vector<1x32xf32> to vector<8x32xf32>
    %c0_5 = arith.constant 0 : index
    %c0_6 = arith.constant 0 : index
    %9 = vector.load %arg1[%c0_5, %c0_6] : memref<8x32xf32, #tpu.memory_space<vmem>>, vector<8x32xf32>
    %c0_7 = arith.constant 0 : index
    %c0_8 = arith.constant 0 : index
    %c0_9 = arith.constant 0 : index
    %10 = vector.load %arg3[%c0_7, %c0_8, %c0_9] : memref<8x8x32xf32, #tpu.memory_space<vmem>>, vector<1x8x32xf32>
    %11 = vector.shape_cast %10 : vector<1x8x32xf32> to vector<8x32xf32>
    %12 = vector.shape_cast %9 : vector<8x32xf32> to vector<1x8x32xf32>
    tpu.vector_store %arg3[%c0_7, %c0_8, %c0_9], %12 {strides = array<i32>} : memref<8x8x32xf32, #tpu.memory_space<vmem>>, vector<1x8x32xf32>,
    %c0_i32 = arith.constant 0 : i32
    %c112_i32 = arith.constant 112 : i32
    %13 = arith.addi %c112_i32, %c0_i32 : i32
    %14 = arith.index_cast %13 : i32 to index
    %c0_10 = arith.constant 0 : index
    %15 = vector.load %arg2[%14, %c0_10] : memref<128x128xf32, #tpu.memory_space<vmem>>, vector<1x16xf32>
    %cst = arith.constant dense<0.000000e+00> : vector<8x80xf32>
    %16 = tpu.matmul %9, %0, %cst {dimension_numbers = #tpu.dot_dimension_numbers<[1], [0], [0], [1], [0, 0, 1, 1], [], []>} : vector<8x32xf32>, vector<32x80xf32>, vector<8x80xf32> -> vector<8x80xf32>
    %17 = vector.extract_strided_slice %16 {offsets = [0, 64], sizes = [8, 16], strides = [1, 1]} : vector<8x80xf32> to vector<8x16xf32>
    %18 = vector.broadcast %15 : vector<1x16xf32> to vector<8x16xf32>
    %19 = arith.addf %17, %18 : vector<8x16xf32>
    %20 = math.tanh %19 : vector<8x16xf32>
    %21 = vector.extract_strided_slice %16 {offsets = [0, 0], sizes = [8, 64], strides = [1, 1]} : vector<8x80xf32> to vector<8x64xf32>
    %cst_11 = arith.constant dense<0.000000e+00> : vector<8x64xf32>
    %22 = tpu.matmul %20, %1, %cst_11 {dimension_numbers = #tpu.dot_dimension_numbers<[1], [0], [0], [1], [0, 0, 1, 1], [], []>} : vector<8x16xf32>, vector<16x64xf32>, vector<8x64xf32> -> vector<8x64xf32>
    %23 = arith.addf %21, %22 : vector<8x64xf32>
    %24 = arith.addf %23, %5 : vector<8x64xf32>
    %25 = math.tanh %24 : vector<8x64xf32>
    %cst_12 = arith.constant dense<0.000000e+00> : vector<8x32xf32>
    %26 = tpu.matmul %25, %2, %cst_12 {dimension_numbers = #tpu.dot_dimension_numbers<[1], [0], [0], [1], [0, 0, 1, 1], [], []>} : vector<8x64xf32>, vector<64x32xf32>, vector<8x32xf32> -> vector<8x32xf32>
    %27 = arith.addf %26, %8 : vector<8x32xf32>
    %28 = arith.addf %27, %9 : vector<8x32xf32>
    %c1_i32 = arith.constant 1 : i32
    %29 = arith.addi %c0_i32, %c1_i32 : i32
    %30 = arith.index_cast %29 : i32 to index
    %c0_13 = arith.constant 0 : index
    %c0_14 = arith.constant 0 : index
    %31 = vector.load %arg3[%30, %c0_13, %c0_14] : memref<8x8x32xf32, #tpu.memory_space<vmem>>, vector<1x8x32xf32>
    %32 = vector.shape_cast %31 : vector<1x8x32xf32> to vector<8x32xf32>
    %33 = vector.shape_cast %28 : vector<8x32xf32> to vector<1x8x32xf32>
    tpu.vector_store %arg3[%30, %c0_13, %c0_14], %33 {strides = array<i32>} : memref<8x8x32xf32, #tpu.memory_space<vmem>>, vector<1x8x32xf32>,
    %c1_i32_15 = arith.constant 1 : i32
    %c112_i32_16 = arith.constant 112 : i32
    %34 = arith.addi %c112_i32_16, %c1_i32_15 : i32
    %35 = arith.index_cast %34 : i32 to index
    %c0_17 = arith.constant 0 : index
    %36 = vector.load %arg2[%35, %c0_17] : memref<128x128xf32, #tpu.memory_space<vmem>>, vector<1x16xf32>
    %cst_18 = arith.constant dense<0.000000e+00> : vector<8x80xf32>
    %37 = tpu.matmul %28, %0, %cst_18 {dimension_numbers = #tpu.dot_dimension_numbers<[1], [0], [0], [1], [0, 0, 1, 1], [], []>} : vector<8x32xf32>, vector<32x80xf32>, vector<8x80xf32> -> vector<8x80xf32>
    %38 = vector.extract_strided_slice %37 {offsets = [0, 64], sizes = [8, 16], strides = [1, 1]} : vector<8x80xf32> to vector<8x16xf32>
    %39 = vector.broadcast %36 : vector<1x16xf32> to vector<8x16xf32>
    %40 = arith.addf %38, %39 : vector<8x16xf32>
    %41 = math.tanh %40 : vector<8x16xf32>
    %42 = vector.extract_strided_slice %37 {offsets = [0, 0], sizes = [8, 64], strides = [1, 1]} : vector<8x80xf32> to vector<8x64xf32>
    %cst_19 = arith.constant dense<0.000000e+00> : vector<8x64xf32>
    %43 = tpu.matmul %41, %1, %cst_19 {dimension_numbers = #tpu.dot_dimension_numbers<[1], [0], [0], [1], [0, 0, 1, 1], [], []>} : vector<8x16xf32>, vector<16x64xf32>, vector<8x64xf32> -> vector<8x64xf32>
    %44 = arith.addf %42, %43 : vector<8x64xf32>
    %45 = arith.addf %44, %5 : vector<8x64xf32>
    %46 = math.tanh %45 : vector<8x64xf32>
    %cst_20 = arith.constant dense<0.000000e+00> : vector<8x32xf32>
    %47 = tpu.matmul %46, %2, %cst_20 {dimension_numbers = #tpu.dot_dimension_numbers<[1], [0], [0], [1], [0, 0, 1, 1], [], []>} : vector<8x64xf32>, vector<64x32xf32>, vector<8x32xf32> -> vector<8x32xf32>
    %48 = arith.addf %47, %8 : vector<8x32xf32>
    %49 = arith.addf %48, %28 : vector<8x32xf32>
    %c1_i32_21 = arith.constant 1 : i32
    %50 = arith.addi %c1_i32_15, %c1_i32_21 : i32
    %51 = arith.index_cast %50 : i32 to index
    %c0_22 = arith.constant 0 : index
    %c0_23 = arith.constant 0 : index
    %52 = vector.load %arg3[%51, %c0_22, %c0_23] : memref<8x8x32xf32, #tpu.memory_space<vmem>>, vector<1x8x32xf32>
    %53 = vector.shape_cast %52 : vector<1x8x32xf32> to vector<8x32xf32>
    %54 = vector.shape_cast %49 : vector<8x32xf32> to vector<1x8x32xf32>
    tpu.vector_store %arg3[%51, %c0_22, %c0_23], %54 {strides = array<i32>} : memref<8x8x32xf32, #tpu.memory_space<vmem>>, vector<1x8x32xf32>,
    %c2_i32 = arith.constant 2 : i32
    %c112_i32_24 = arith.constant 112 : i32
    %55 = arith.addi %c112_i32_24, %c2_i32 : i32
    %56 = arith.index_cast %55 : i32 to index
    %c0_25 = arith.constant 0 : index
    %57 = vector.load %arg2[%56, %c0_25] : memref<128x128xf32, #tpu.memory_space<vmem>>, vector<1x16xf32>
    %cst_26 = arith.constant dense<0.000000e+00> : vector<8x80xf32>
    %58 = tpu.matmul %49, %0, %cst_26 {dimension_numbers = #tpu.dot_dimension_numbers<[1], [0], [0], [1], [0, 0, 1, 1], [], []>} : vector<8x32xf32>, vector<32x80xf32>, vector<8x80xf32> -> vector<8x80xf32>
    %59 = vector.extract_strided_slice %58 {offsets = [0, 64], sizes = [8, 16], strides = [1, 1]} : vector<8x80xf32> to vector<8x16xf32>
    %60 = vector.broadcast %57 : vector<1x16xf32> to vector<8x16xf32>
    %61 = arith.addf %59, %60 : vector<8x16xf32>
    %62 = math.tanh %61 : vector<8x16xf32>
    %63 = vector.extract_strided_slice %58 {offsets = [0, 0], sizes = [8, 64], strides = [1, 1]} : vector<8x80xf32> to vector<8x64xf32>
    %cst_27 = arith.constant dense<0.000000e+00> : vector<8x64xf32>
    %64 = tpu.matmul %62, %1, %cst_27 {dimension_numbers = #tpu.dot_dimension_numbers<[1], [0], [0], [1], [0, 0, 1, 1], [], []>} : vector<8x16xf32>, vector<16x64xf32>, vector<8x64xf32> -> vector<8x64xf32>
    %65 = arith.addf %63, %64 : vector<8x64xf32>
    %66 = arith.addf %65, %5 : vector<8x64xf32>
    %67 = math.tanh %66 : vector<8x64xf32>
    %cst_28 = arith.constant dense<0.000000e+00> : vector<8x32xf32>
    %68 = tpu.matmul %67, %2, %cst_28 {dimension_numbers = #tpu.dot_dimension_numbers<[1], [0], [0], [1], [0, 0, 1, 1], [], []>} : vector<8x64xf32>, vector<64x32xf32>, vector<8x32xf32> -> vector<8x32xf32>
    %69 = arith.addf %68, %8 : vector<8x32xf32>
    %70 = arith.addf %69, %49 : vector<8x32xf32>
    %c1_i32_29 = arith.constant 1 : i32
    %71 = arith.addi %c2_i32, %c1_i32_29 : i32
    %72 = arith.index_cast %71 : i32 to index
    %c0_30 = arith.constant 0 : index
    %c0_31 = arith.constant 0 : index
    %73 = vector.load %arg3[%72, %c0_30, %c0_31] : memref<8x8x32xf32, #tpu.memory_space<vmem>>, vector<1x8x32xf32>
    %74 = vector.shape_cast %73 : vector<1x8x32xf32> to vector<8x32xf32>
    %75 = vector.shape_cast %70 : vector<8x32xf32> to vector<1x8x32xf32>
    tpu.vector_store %arg3[%72, %c0_30, %c0_31], %75 {strides = array<i32>} : memref<8x8x32xf32, #tpu.memory_space<vmem>>, vector<1x8x32xf32>,
    %c3_i32 = arith.constant 3 : i32
    %c112_i32_32 = arith.constant 112 : i32
    %76 = arith.addi %c112_i32_32, %c3_i32 : i32
    %77 = arith.index_cast %76 : i32 to index
    %c0_33 = arith.constant 0 : index
    %78 = vector.load %arg2[%77, %c0_33] : memref<128x128xf32, #tpu.memory_space<vmem>>, vector<1x16xf32>
    %cst_34 = arith.constant dense<0.000000e+00> : vector<8x80xf32>
    %79 = tpu.matmul %70, %0, %cst_34 {dimension_numbers = #tpu.dot_dimension_numbers<[1], [0], [0], [1], [0, 0, 1, 1], [], []>} : vector<8x32xf32>, vector<32x80xf32>, vector<8x80xf32> -> vector<8x80xf32>
    %80 = vector.extract_strided_slice %79 {offsets = [0, 64], sizes = [8, 16], strides = [1, 1]} : vector<8x80xf32> to vector<8x16xf32>
    %81 = vector.broadcast %78 : vector<1x16xf32> to vector<8x16xf32>
    %82 = arith.addf %80, %81 : vector<8x16xf32>
    %83 = math.tanh %82 : vector<8x16xf32>
    %84 = vector.extract_strided_slice %79 {offsets = [0, 0], sizes = [8, 64], strides = [1, 1]} : vector<8x80xf32> to vector<8x64xf32>
    %cst_35 = arith.constant dense<0.000000e+00> : vector<8x64xf32>
    %85 = tpu.matmul %83, %1, %cst_35 {dimension_numbers = #tpu.dot_dimension_numbers<[1], [0], [0], [1], [0, 0, 1, 1], [], []>} : vector<8x16xf32>, vector<16x64xf32>, vector<8x64xf32> -> vector<8x64xf32>
    %86 = arith.addf %84, %85 : vector<8x64xf32>
    %87 = arith.addf %86, %5 : vector<8x64xf32>
    %88 = math.tanh %87 : vector<8x64xf32>
    %cst_36 = arith.constant dense<0.000000e+00> : vector<8x32xf32>
    %89 = tpu.matmul %88, %2, %cst_36 {dimension_numbers = #tpu.dot_dimension_numbers<[1], [0], [0], [1], [0, 0, 1, 1], [], []>} : vector<8x64xf32>, vector<64x32xf32>, vector<8x32xf32> -> vector<8x32xf32>
    %90 = arith.addf %89, %8 : vector<8x32xf32>
    %91 = arith.addf %90, %70 : vector<8x32xf32>
    %c1_i32_37 = arith.constant 1 : i32
    %92 = arith.addi %c3_i32, %c1_i32_37 : i32
    %93 = arith.index_cast %92 : i32 to index
    %c0_38 = arith.constant 0 : index
    %c0_39 = arith.constant 0 : index
    %94 = vector.load %arg3[%93, %c0_38, %c0_39] : memref<8x8x32xf32, #tpu.memory_space<vmem>>, vector<1x8x32xf32>
    %95 = vector.shape_cast %94 : vector<1x8x32xf32> to vector<8x32xf32>
    %96 = vector.shape_cast %91 : vector<8x32xf32> to vector<1x8x32xf32>
    tpu.vector_store %arg3[%93, %c0_38, %c0_39], %96 {strides = array<i32>} : memref<8x8x32xf32, #tpu.memory_space<vmem>>, vector<1x8x32xf32>,
    %c4_i32 = arith.constant 4 : i32
    %c112_i32_40 = arith.constant 112 : i32
    %97 = arith.addi %c112_i32_40, %c4_i32 : i32
    %98 = arith.index_cast %97 : i32 to index
    %c0_41 = arith.constant 0 : index
    %99 = vector.load %arg2[%98, %c0_41] : memref<128x128xf32, #tpu.memory_space<vmem>>, vector<1x16xf32>
    %cst_42 = arith.constant dense<0.000000e+00> : vector<8x80xf32>
    %100 = tpu.matmul %91, %0, %cst_42 {dimension_numbers = #tpu.dot_dimension_numbers<[1], [0], [0], [1], [0, 0, 1, 1], [], []>} : vector<8x32xf32>, vector<32x80xf32>, vector<8x80xf32> -> vector<8x80xf32>
    %101 = vector.extract_strided_slice %100 {offsets = [0, 64], sizes = [8, 16], strides = [1, 1]} : vector<8x80xf32> to vector<8x16xf32>
    %102 = vector.broadcast %99 : vector<1x16xf32> to vector<8x16xf32>
    %103 = arith.addf %101, %102 : vector<8x16xf32>
    %104 = math.tanh %103 : vector<8x16xf32>
    %105 = vector.extract_strided_slice %100 {offsets = [0, 0], sizes = [8, 64], strides = [1, 1]} : vector<8x80xf32> to vector<8x64xf32>
    %cst_43 = arith.constant dense<0.000000e+00> : vector<8x64xf32>
    %106 = tpu.matmul %104, %1, %cst_43 {dimension_numbers = #tpu.dot_dimension_numbers<[1], [0], [0], [1], [0, 0, 1, 1], [], []>} : vector<8x16xf32>, vector<16x64xf32>, vector<8x64xf32> -> vector<8x64xf32>
    %107 = arith.addf %105, %106 : vector<8x64xf32>
    %108 = arith.addf %107, %5 : vector<8x64xf32>
    %109 = math.tanh %108 : vector<8x64xf32>
    %cst_44 = arith.constant dense<0.000000e+00> : vector<8x32xf32>
    %110 = tpu.matmul %109, %2, %cst_44 {dimension_numbers = #tpu.dot_dimension_numbers<[1], [0], [0], [1], [0, 0, 1, 1], [], []>} : vector<8x64xf32>, vector<64x32xf32>, vector<8x32xf32> -> vector<8x32xf32>
    %111 = arith.addf %110, %8 : vector<8x32xf32>
    %112 = arith.addf %111, %91 : vector<8x32xf32>
    %c1_i32_45 = arith.constant 1 : i32
    %113 = arith.addi %c4_i32, %c1_i32_45 : i32
    %114 = arith.index_cast %113 : i32 to index
    %c0_46 = arith.constant 0 : index
    %c0_47 = arith.constant 0 : index
    %115 = vector.load %arg3[%114, %c0_46, %c0_47] : memref<8x8x32xf32, #tpu.memory_space<vmem>>, vector<1x8x32xf32>
    %116 = vector.shape_cast %115 : vector<1x8x32xf32> to vector<8x32xf32>
    %117 = vector.shape_cast %112 : vector<8x32xf32> to vector<1x8x32xf32>
    tpu.vector_store %arg3[%114, %c0_46, %c0_47], %117 {strides = array<i32>} : memref<8x8x32xf32, #tpu.memory_space<vmem>>, vector<1x8x32xf32>,
    %c5_i32 = arith.constant 5 : i32
    %c112_i32_48 = arith.constant 112 : i32
    %118 = arith.addi %c112_i32_48, %c5_i32 : i32
    %119 = arith.index_cast %118 : i32 to index
    %c0_49 = arith.constant 0 : index
    %120 = vector.load %arg2[%119, %c0_49] : memref<128x128xf32, #tpu.memory_space<vmem>>, vector<1x16xf32>
    %cst_50 = arith.constant dense<0.000000e+00> : vector<8x80xf32>
    %121 = tpu.matmul %112, %0, %cst_50 {dimension_numbers = #tpu.dot_dimension_numbers<[1], [0], [0], [1], [0, 0, 1, 1], [], []>} : vector<8x32xf32>, vector<32x80xf32>, vector<8x80xf32> -> vector<8x80xf32>
    %122 = vector.extract_strided_slice %121 {offsets = [0, 64], sizes = [8, 16], strides = [1, 1]} : vector<8x80xf32> to vector<8x16xf32>
    %123 = vector.broadcast %120 : vector<1x16xf32> to vector<8x16xf32>
    %124 = arith.addf %122, %123 : vector<8x16xf32>
    %125 = math.tanh %124 : vector<8x16xf32>
    %126 = vector.extract_strided_slice %121 {offsets = [0, 0], sizes = [8, 64], strides = [1, 1]} : vector<8x80xf32> to vector<8x64xf32>
    %cst_51 = arith.constant dense<0.000000e+00> : vector<8x64xf32>
    %127 = tpu.matmul %125, %1, %cst_51 {dimension_numbers = #tpu.dot_dimension_numbers<[1], [0], [0], [1], [0, 0, 1, 1], [], []>} : vector<8x16xf32>, vector<16x64xf32>, vector<8x64xf32> -> vector<8x64xf32>
    %128 = arith.addf %126, %127 : vector<8x64xf32>
    %129 = arith.addf %128, %5 : vector<8x64xf32>
    %130 = math.tanh %129 : vector<8x64xf32>
    %cst_52 = arith.constant dense<0.000000e+00> : vector<8x32xf32>
    %131 = tpu.matmul %130, %2, %cst_52 {dimension_numbers = #tpu.dot_dimension_numbers<[1], [0], [0], [1], [0, 0, 1, 1], [], []>} : vector<8x64xf32>, vector<64x32xf32>, vector<8x32xf32> -> vector<8x32xf32>
    %132 = arith.addf %131, %8 : vector<8x32xf32>
    %133 = arith.addf %132, %112 : vector<8x32xf32>
    %c1_i32_53 = arith.constant 1 : i32
    %134 = arith.addi %c5_i32, %c1_i32_53 : i32
    %135 = arith.index_cast %134 : i32 to index
    %c0_54 = arith.constant 0 : index
    %c0_55 = arith.constant 0 : index
    %136 = vector.load %arg3[%135, %c0_54, %c0_55] : memref<8x8x32xf32, #tpu.memory_space<vmem>>, vector<1x8x32xf32>
    %137 = vector.shape_cast %136 : vector<1x8x32xf32> to vector<8x32xf32>
    %138 = vector.shape_cast %133 : vector<8x32xf32> to vector<1x8x32xf32>
    tpu.vector_store %arg3[%135, %c0_54, %c0_55], %138 {strides = array<i32>} : memref<8x8x32xf32, #tpu.memory_space<vmem>>, vector<1x8x32xf32>,
    %c6_i32 = arith.constant 6 : i32
    %c112_i32_56 = arith.constant 112 : i32
    %139 = arith.addi %c112_i32_56, %c6_i32 : i32
    %140 = arith.index_cast %139 : i32 to index
    %c0_57 = arith.constant 0 : index
    %141 = vector.load %arg2[%140, %c0_57] : memref<128x128xf32, #tpu.memory_space<vmem>>, vector<1x16xf32>
    %cst_58 = arith.constant dense<0.000000e+00> : vector<8x80xf32>
    %142 = tpu.matmul %133, %0, %cst_58 {dimension_numbers = #tpu.dot_dimension_numbers<[1], [0], [0], [1], [0, 0, 1, 1], [], []>} : vector<8x32xf32>, vector<32x80xf32>, vector<8x80xf32> -> vector<8x80xf32>
    %143 = vector.extract_strided_slice %142 {offsets = [0, 64], sizes = [8, 16], strides = [1, 1]} : vector<8x80xf32> to vector<8x16xf32>
    %144 = vector.broadcast %141 : vector<1x16xf32> to vector<8x16xf32>
    %145 = arith.addf %143, %144 : vector<8x16xf32>
    %146 = math.tanh %145 : vector<8x16xf32>
    %147 = vector.extract_strided_slice %142 {offsets = [0, 0], sizes = [8, 64], strides = [1, 1]} : vector<8x80xf32> to vector<8x64xf32>
    %cst_59 = arith.constant dense<0.000000e+00> : vector<8x64xf32>
    %148 = tpu.matmul %146, %1, %cst_59 {dimension_numbers = #tpu.dot_dimension_numbers<[1], [0], [0], [1], [0, 0, 1, 1], [], []>} : vector<8x16xf32>, vector<16x64xf32>, vector<8x64xf32> -> vector<8x64xf32>
    %149 = arith.addf %147, %148 : vector<8x64xf32>
    %150 = arith.addf %149, %5 : vector<8x64xf32>
    %151 = math.tanh %150 : vector<8x64xf32>
    %cst_60 = arith.constant dense<0.000000e+00> : vector<8x32xf32>
    %152 = tpu.matmul %151, %2, %cst_60 {dimension_numbers = #tpu.dot_dimension_numbers<[1], [0], [0], [1], [0, 0, 1, 1], [], []>} : vector<8x64xf32>, vector<64x32xf32>, vector<8x32xf32> -> vector<8x32xf32>
    %153 = arith.addf %152, %8 : vector<8x32xf32>
    %154 = arith.addf %153, %133 : vector<8x32xf32>
    %c1_i32_61 = arith.constant 1 : i32
    %155 = arith.addi %c6_i32, %c1_i32_61 : i32
    %156 = arith.index_cast %155 : i32 to index
    %c0_62 = arith.constant 0 : index
    %c0_63 = arith.constant 0 : index
    %157 = vector.load %arg3[%156, %c0_62, %c0_63] : memref<8x8x32xf32, #tpu.memory_space<vmem>>, vector<1x8x32xf32>
    %158 = vector.shape_cast %157 : vector<1x8x32xf32> to vector<8x32xf32>
    %159 = vector.shape_cast %154 : vector<8x32xf32> to vector<1x8x32xf32>
    tpu.vector_store %arg3[%156, %c0_62, %c0_63], %159 {strides = array<i32>} : memref<8x8x32xf32, #tpu.memory_space<vmem>>, vector<1x8x32xf32>,
    %c7_i32 = arith.constant 7 : i32
    return
  }
  func.func @transform_0(%arg0: i32) -> (i32, i32) {
    %c0_i32 = arith.constant 0 : i32
    %c0_i32_0 = arith.constant 0 : i32
    return %arg0, %c0_i32 : i32, i32
  }
  func.func @transform_1(%arg0: i32) -> (i32, i32) {
    %c0_i32 = arith.constant 0 : i32
    %c0_i32_0 = arith.constant 0 : i32
    %c0_i32_1 = arith.constant 0 : i32
    return %c0_i32, %c0_i32_0 : i32, i32
  }
  func.func @transform_2(%arg0: i32) -> (i32, i32, i32) {
    %c0_i32 = arith.constant 0 : i32
    %c0_i32_0 = arith.constant 0 : i32
    %c0_i32_1 = arith.constant 0 : i32
    return %c0_i32, %arg0, %c0_i32_0 : i32, i32, i32
  }
}

</mosaic_0001>

<llo_original>
// kernel: tpu_custom_call.1
$region0: #{tpu_custom_call.1}
  #allocation0 [shape = 'u32[]', space=smem, size = 0x4, offset = 0x4, fixed_abs, tag = 'smem constant byte address 0x4 - core index']
  #allocation1 [shape = 'u32[144,128]{1,0:T(1,128)}', space=vmem, size = 0x12000, scoped, tag = 'internal scratch']
  %s0 = inlined_call_operand.hbm [shape: f32[16,32], index: 0, kind: input, shape index: {}]
  %s1 = inlined_call_operand.hbm [shape: f32[128,128], index: 1, kind: input, shape index: {}]
  %s2 = inlined_call_operand.hbm [shape: f32[8,16,32], index: 2, kind: output, shape index: {}]
  %s3 = sld [smem:[#allocation0]]
  $region49: #{tpu_custom_call.1} parent=0
    _
  %s5 = ssub.s32 1, %s3
  %s6 = scalar_select 0, %s5, %s3
  $region1: #{tpu_custom_call.1} parent=0
    #allocation2 [shape = 'u8[8192]{0}', space=vmem, size = 0x2000, scoped, tag = 'input window, operand 0']
    #allocation3 [shape = 's32[2]{0}', space=sflag, size = 0x8, scoped, tag = 'scoped memory for tpu_custom_call.1']
    #allocation4 [shape = 's32[2]{0}', space=sflag, size = 0x8, scoped, tag = 'scoped memory for tpu_custom_call.1']
    #allocation5 [shape = 'u8[65536]{0}', space=vmem, size = 0x10000, scoped, tag = 'input window, operand 1, single buffered']
    #allocation6 [shape = 's32[1]{0}', space=sflag, size = 0x4, scoped, tag = 'scoped memory for tpu_custom_call.1']
    #allocation7 [shape = 'u8[65536]{0}', space=vmem, size = 0x10000, scoped, tag = 'output window, operand 0']
    %7 = vsyncpa [#allocation3], 0
    %s8 = scalar_lea.sflag [#allocation3], 1
    %9 = vsyncpa %s8, 0
    %10 = vsyncpa [#allocation6], 0
    %11 = vsyncpa [#allocation4], 0
    %s12 = scalar_lea.sflag [#allocation4], 1
    %13 = vsyncpa %s12, 0
    loop: start=0, step=1, limit=4
    $region2: #{tpu_custom_call.1} parent=1 // loop_pre_header
      _
    $region3: #{tpu_custom_call.1} parent=1 // loop_header
      %s15 = sphi 0, %s19
      %p16 = scmp.ge.s32.totalorder %s15, 4
      %s25 = sphi 0, %s27
      %s28 = sphi 0, %s25
      %s29 = sphi 0, %s28
      %s45 = sphi 0, %s29
      %s49 = sphi 0, %s49
      %s51 = sphi 0, %s49
      %s52 = sphi 0, %s51
      %s66 = sphi 0, %s52
      %s72 = sphi 0, %s74
      %s75 = sphi 0, %s72
      %s76 = sphi 0, %s75
      %s92 = sphi 0, %s76
    $region4: #{tpu_custom_call.1} parent=1 // loop_header_branch
      %18 = sbr.rel (%p16) target = $region8
    $region5: #{tpu_custom_call.1} parent=1 // loop_body
      %s20 = ssub.s32 %s15, 1
      %s21 = ssub.s32 %s15, 2
      %s22 = sadd.s32 %s15, 1
      %s23 = ssub.s32 %s15, %s22
      %p24 = scmp.eq.s32.totalorder %s23, 0
      %s26 = sadd.s32 %s25, 1
      %s27 = scalar_select %p24, %s25, %s26
      %p30 = pneg %p24
      %p31 = scmp.eq.s32.totalorder %s15, 1
      %p32 = por %p30, %p31
      %p33 = scmp.ne.s32.totalorder %s25, %s28
      %p34 = scmp.eq.s32.totalorder %s15, 0
      %p35 = por %p33, %p34
      %p36 = scmp.ne.s32.totalorder %s25, %s28
      %p37 = scmp.eq.s32.totalorder %s20, 1
      %p38 = por %p36, %p37
      %p39 = scmp.ne.s32.totalorder %s28, %s29
      %p40 = scmp.eq.s32.totalorder %s20, 0
      %p41 = por %p39, %p40
      %p42 = scmp.ne.s32.totalorder %s28, %s29
      %p43 = scmp.eq.s32.totalorder %s21, 1
      %p44 = por %p42, %p43
      %p46 = scmp.ne.s32.totalorder %s29, %s45
      %p47 = scmp.eq.s32.totalorder %s21, 0
      %p48 = por %p46, %p47
      %s50 = sadd.s32 %s49, 1
      %p53 = scmp.eq.s32.totalorder %s15, 1
      %p54 = scmp.ne.s32.totalorder %s49, %s51
      %p55 = scmp.eq.s32.totalorder %s15, 0
      %p56 = por %p54, %p55
      %p57 = scmp.ne.s32.totalorder %s49, %s51
      %p58 = scmp.eq.s32.totalorder %s20, 1
      %p59 = por %p57, %p58
      %p60 = scmp.ne.s32.totalorder %s51, %s52
      %p61 = scmp.eq.s32.totalorder %s20, 0
      %p62 = por %p60, %p61
      %p63 = scmp.ne.s32.totalorder %s51, %s52
      %p64 = scmp.eq.s32.totalorder %s21, 1
      %p65 = por %p63, %p64
      %p67 = scmp.ne.s32.totalorder %s52, %s66
      %p68 = scmp.eq.s32.totalorder %s21, 0
      %p69 = por %p67, %p68
      %s70 = ssub.s32 %s15, %s22
      %p71 = scmp.eq.s32.totalorder %s70, 0
      %s73 = sadd.s32 %s72, 1
      %s74 = scalar_select %p71, %s72, %s73
      %p77 = pneg %p71
      %p78 = scmp.eq.s32.totalorder %s15, 1
      %p79 = por %p77, %p78
      %p80 = scmp.ne.s32.totalorder %s72, %s75
      %p81 = scmp.eq.s32.totalorder %s15, 0
      %p82 = por %p80, %p81
      %p83 = scmp.ne.s32.totalorder %s72, %s75
      %p84 = scmp.eq.s32.totalorder %s20, 1
      %p85 = por %p83, %p84
      %p86 = scmp.ne.s32.totalorder %s75, %s76
      %p87 = scmp.eq.s32.totalorder %s20, 0
      %p88 = por %p86, %p87
      %p89 = scmp.ne.s32.totalorder %s75, %s76
      %p90 = scmp.eq.s32.totalorder %s21, 1
      %p91 = por %p89, %p90
      %p93 = scmp.ne.s32.totalorder %s76, %s92
      %p94 = scmp.eq.s32.totalorder %s21, 0
      %p95 = por %p93, %p94
      %p96 = scmp.le.s32.totalorder 1, %s15
      %p97 = scmp.lt.s32.totalorder %s15, 3
      %p98 = pnand %p96, %p97
      %p99 = pneg %p98
      // Predicated region
      $region9: #{tpu_custom_call.1} parent=5 // pred_check
        _
      $region10: #{tpu_custom_call.1} parent=5 // pred_check_branch
        %101 = sbr.rel (%p98) target = $region12
      $region11: #{tpu_custom_call.1} parent=5 // pred_region
        %s102 = ssub.s32 %s15, 1
        // Predicated region
        $region13: #{tpu_custom_call.1} parent=11 // pred_check
          %p103 = pneg %p62
        $region14: #{tpu_custom_call.1} parent=11 // pred_check_branch
          %105 = sbr.rel (%p103) target = $region16
        $region15: #{tpu_custom_call.1} parent=11 // pred_region
          %s107 = ssub.s32 2048, 2048
          %108 = vsyncadd [#allocation6], %s107
          %s109 = sshll.u32 [#allocation5], 4
          %s110 = int_to_ptr.vmem [resolvable:$true] %s109
          %115 = dma.hbm_to_vmem [thread:$0]  %s1, 2048, %s110, [#allocation6], 128, 128, 8
        $region16: #{tpu_custom_call.1} parent=11 // pred_fallthru
          _
      $region12: #{tpu_custom_call.1} parent=5 // pred_fallthru
        _
      %p116 = scmp.lt.s32.totalorder %s15, 2
      // Predicated region
      $region17: #{tpu_custom_call.1} parent=5 // pred_check
        %p117 = pneg %p116
      $region18: #{tpu_custom_call.1} parent=5 // pred_check_branch
        %119 = sbr.rel (%p117) target = $region20
      $region19: #{tpu_custom_call.1} parent=5 // pred_region
        // Predicated region
        $region21: #{tpu_custom_call.1} parent=19 // pred_check
          %p120 = pneg %p35
        $region22: #{tpu_custom_call.1} parent=19 // pred_check_branch
          %122 = sbr.rel (%p120) target = $region24
        $region23: #{tpu_custom_call.1} parent=19 // pred_region
          %s123 = sand.u32 %s25, 1
          %s124 = scalar_lea.sflag [#allocation3], %s123
          %s125 = sand.u32 %s25, 1
          %s126 = smul.addr %s125, 8
          %s127 = scalar_lea.vmem [#allocation2], %s126
          %s129 = ssub.s32 128, 128
          %130 = vsyncadd %s124, %s129
          %s131 = smul.addr %s15, 128
          %s132 = scalar_lea.hbm %s0, %s131
          %s134 = sshll.u32 %s127, 4
          %s135 = int_to_ptr.vmem [resolvable:$true] %s134
          %137 = dma.hbm_to_vmem [thread:$0]  %s132, 128, %s135, %s124
        $region24: #{tpu_custom_call.1} parent=19 // pred_fallthru
          _
      $region20: #{tpu_custom_call.1} parent=5 // pred_fallthru
        _
      %p138 = scmp.le.s32.totalorder 1, %s15
      %p139 = scmp.lt.s32.totalorder %s15, 3
      %p140 = pnand %p138, %p139
      %p141 = pneg %p140
      // Predicated region
      $region25: #{tpu_custom_call.1} parent=5 // pred_check
        _
      $region26: #{tpu_custom_call.1} parent=5 // pred_check_branch
        %143 = sbr.rel (%p140) target = $region28
      $region27: #{tpu_custom_call.1} parent=5 // pred_region
        %s144 = ssub.s32 %s15, 1
        %s145 = sand.u32 %s28, 1
        %s146 = scalar_lea.sflag [#allocation3], %s145
        %s147 = sand.u32 %s28, 1
        %s148 = smul.addr %s147, 8
        %s149 = scalar_lea.vmem [#allocation2], %s148
        // Predicated region
        $region29: #{tpu_custom_call.1} parent=27 // pred_check
          %p150 = pneg %p41
        $region30: #{tpu_custom_call.1} parent=27 // pred_check_branch
          %152 = sbr.rel (%p150) target = $region32
        $region31: #{tpu_custom_call.1} parent=27 // pred_region
          %153 = dma.done %s146, 128
        $region32: #{tpu_custom_call.1} parent=27 // pred_fallthru
          _
        // Predicated region
        $region33: #{tpu_custom_call.1} parent=27 // pred_check
          %p154 = pneg %p62
        $region34: #{tpu_custom_call.1} parent=27 // pred_check_branch
          %156 = sbr.rel (%p154) target = $region36
        $region35: #{tpu_custom_call.1} parent=27 // pred_region
          %157 = dma.done [#allocation6], 2048
        $region36: #{tpu_custom_call.1} parent=27 // pred_fallthru
          _
        %s158 = sand.u32 %s28, 1
        %s159 = scalar_lea.sflag [#allocation3], %s158
        %s160 = sand.u32 %s28, 1
        %s161 = smul.addr %s160, 8
        %s162 = scalar_lea.vmem [#allocation2], %s161
        %p163 = pneg %p41
        %p164 = pneg %p38
        %p165 = pneg %p62
        %p166 = pneg %p59
        %p167 = pneg %p88
        %p168 = pneg %p85
        %s169 = sand.u32 %s75, 1
        %s170 = scalar_lea.sflag [#allocation4], %s169
        %s171 = sand.u32 %s75, 1
        %s172 = smul.addr %s171, 64
        %s173 = scalar_lea.vmem [#allocation7], %s172
        %v174 = vld [vmem:[#allocation5] sm:$0xff]
        %v175 = vld [vmem:[#allocation5 + $0x8] sm:$0xff]
        %v176 = vld [vmem:[#allocation5 + $0x10] sm:$0xff]
        %v177 = vld [vmem:[#allocation5 + $0x18] sm:$0xff]
        %v178 = vld [vmem:[#allocation5 + $0x20] sm:$0xff]
        %v179 = vld [vmem:[#allocation5 + $0x28] sm:$0xff]
        %v180 = vld [vmem:[#allocation5 + $0x30] sm:$0xff]
        %v181 = vld [vmem:[#allocation5 + $0x38] sm:$0xff]
        %v182 = vld [vmem:[#allocation5 + $0x40] sm:$0xff]
        %v183 = vld [vmem:[#allocation5 + $0x48] sm:$0xff]
        %v184 = vld [vmem:[#allocation5 + $0x50] sm:$0xff]
        %v185 = vld [vmem:[#allocation5 + $0x58] sm:$0xff]
        %v186 = vld [vmem:[#allocation5 + $0x60] sm:$0xff]
        %v187 = vld [vmem:[#allocation5 + $0x68] sm:$0xff]
        %v188 = vld [vmem:[#allocation5 + $0x78] sm:$0x1]
        %v189 = vlaneseq
        %v190 = vshrl.u32 %v189, 7
        %v191 = vsub.s32 0, %v190
        %v192 = vrot.slane %v188, %v191
        %v193 = vld [vmem:[#allocation5 + $0x79] sm:$0x1]
        %v194 = vlaneseq
        %v195 = vshrl.u32 %v194, 7
        %v196 = vsub.s32 0, %v195
        %v197 = vrot.slane %v193, %v196
        %v198 = vld [vmem:[%s149] sm:$0xff]
        %vm199 = vcmask 261120
        %200 = vst.msk [vmem:[%s173] sm:$0xff] %vm199, %v198
        %v201 = vld [vmem:[#allocation5 + $0x70] sm:$0x1]
        %v203 = vsel %vm199, %v198, 0
        %205 = vmatprep.subr.mxu0 0.0
        %206 = vmatpush1.msra.mxu0 %v174
        %207 = vmatprep.subr.mxu0 0.0
        %208 = vmatpush1.msra.mxu0 %v175
        %209 = vmatprep.subr.mxu0 0.0
        %210 = vmatpush1.msra.mxu0 %v176
        %211 = vmatprep.subr.mxu0 0.0
        %212 = vmatpush1.msra.mxu0 %v177
        %213 = vmatprep.subr.mxu0 0.0
        %214 = vmatpush1.msra.mxu0 0.0
        %215 = vmatprep.subr.mxu0 0.0
        %216 = vmatpush1.msra.mxu0 0.0
        %217 = vmatprep.subr.mxu0 0.0
        %218 = vmatpush1.msra.mxu0 0.0
        %219 = vmatprep.subr.mxu0 0.0
        %220 = vmatpush1.msra.mxu0 0.0
        %221 = vmatprep.subr.mxu0 0.0
        %222 = vmatpush1.msra.mxu0 0.0
        %223 = vmatprep.subr.mxu0 0.0
        %224 = vmatpush1.msra.mxu0 0.0
        %225 = vmatprep.subr.mxu0 0.0
        %226 = vmatpush1.msra.mxu0 0.0
        %227 = vmatprep.subr.mxu0 0.0
        %228 = vmatpush1.msra.mxu0 0.0
        %229 = vmatprep.subr.mxu0 0.0
        %230 = vmatpush1.msra.mxu0 0.0
        %231 = vmatprep.subr.mxu0 0.0
        %232 = vmatpush1.msra.mxu0 0.0
        %233 = vmatprep.subr.mxu0 0.0
        %234 = vmatpush1.msra.mxu0 0.0
        %235 = vmatprep.subr.mxu0 0.0
        %236 = vmatpush1.msra.mxu0 0.0
        %237 = vmatprep.subr.mxu0 0.0
        %238 = vmatpush1.msra.mxu0 0.0
        %239 = vmatprep.subr.mxu0 0.0
        %240 = vmatpush1.msra.mxu0 0.0
        %241 = vmatprep.subr.mxu0 0.0
        %242 = vmatpush1.msra.mxu0 0.0
        %243 = vmatprep.subr.mxu0 0.0
        %244 = vmatpush1.msra.mxu0 0.0
        %245 = vmatprep.subr.mxu0 0.0
        %246 = vmatpush1.msra.mxu0 0.0
        %247 = vmatprep.subr.mxu0 0.0
        %248 = vmatpush1.msra.mxu0 0.0
        %249 = vmatprep.subr.mxu0 0.0
        %250 = vmatpush1.msra.mxu0 0.0
        %251 = vmatprep.subr.mxu0 0.0
        %252 = vmatpush1.msra.mxu0 0.0
        %253 = vmatprep.subr.mxu0 0.0
        %254 = vmatpush1.msra.mxu0 0.0
        %255 = vmatprep.subr.mxu0 0.0
        %256 = vmatpush1.msra.mxu0 0.0
        %257 = vmatprep.subr.mxu0 0.0
        %258 = vmatpush1.msra.mxu0 0.0
        %259 = vmatprep.subr.mxu0 0.0
        %260 = vmatpush1.msra.mxu0 0.0
        %261 = vmatprep.subr.mxu0 0.0
        %262 = vmatpush1.msra.mxu0 0.0
        %263 = vmatprep.subr.mxu0 0.0
        %264 = vmatpush1.msra.mxu0 0.0
        %265 = vmatprep.subr.mxu0 0.0
        %266 = vmatpush1.msra.mxu0 0.0
        %267 = vmatprep.subr.mxu0 0.0
        %268 = vmatpush1.msra.mxu0 0.0
        %269 = vmatprep.mubr.f32.mxu0 0.0
        %270 = vmatmul.mubr.f32.gmra.mrb[0].mxu0 %v203
        %v271 = vpop.f32.mrb[0].mxu0
        %v272 = vadd.f32 0.0, %v271
        %v273 = vpop.f32.mrb[0].mxu0
        %274 = vdwg.mxu0
        %v275 = vlaneseq
        %v276 = vshrl.u32 %v275, 7
        %v277 = vsub.s32 0, %v276
        %v278 = vrot.slane %v201, %v277
        %280 = vrot.lane.b32.xlu0 %v278, 64
        %v281 = vpop.permute.xlu0 %280
        %v283 = vadd.f32 %v272, %v281
        %v284 = vtanh.pop %v283
        %286 = vrot.lane.b32.xlu0 %v284, 64
        %v287 = vpop.permute.xlu0 %286
        %vm288 = vcmask 130048
        %v289 = vsel %vm288, %v287, 0
        %291 = vmatprep.subr.mxu0 0.0
        %292 = vmatpush1.msra.mxu0 %v178
        %293 = vmatprep.subr.mxu0 0.0
        %294 = vmatpush1.msra.mxu0 %v179
        %295 = vmatprep.subr.mxu0 0.0
        %296 = vmatpush1.msra.mxu0 0.0
        %297 = vmatprep.subr.mxu0 0.0
        %298 = vmatpush1.msra.mxu0 0.0
        %299 = vmatprep.subr.mxu0 0.0
        %300 = vmatpush1.msra.mxu0 0.0
        %301 = vmatprep.subr.mxu0 0.0
        %302 = vmatpush1.msra.mxu0 0.0
        %303 = vmatprep.subr.mxu0 0.0
        %304 = vmatpush1.msra.mxu0 0.0
        %305 = vmatprep.subr.mxu0 0.0
        %306 = vmatpush1.msra.mxu0 0.0
        %307 = vmatprep.subr.mxu0 0.0
        %308 = vmatpush1.msra.mxu0 0.0
        %309 = vmatprep.subr.mxu0 0.0
        %310 = vmatpush1.msra.mxu0 0.0
        %311 = vmatprep.subr.mxu0 0.0
        %312 = vmatpush1.msra.mxu0 0.0
        %313 = vmatprep.subr.mxu0 0.0
        %314 = vmatpush1.msra.mxu0 0.0
        %315 = vmatprep.subr.mxu0 0.0
        %316 = vmatpush1.msra.mxu0 0.0
        %317 = vmatprep.subr.mxu0 0.0
        %318 = vmatpush1.msra.mxu0 0.0
        %319 = vmatprep.subr.mxu0 0.0
        %320 = vmatpush1.msra.mxu0 0.0
        %321 = vmatprep.subr.mxu0 0.0
        %322 = vmatpush1.msra.mxu0 0.0
        %323 = vmatprep.subr.mxu0 0.0
        %324 = vmatpush1.msra.mxu0 0.0
        %325 = vmatprep.subr.mxu0 0.0
        %326 = vmatpush1.msra.mxu0 0.0
        %327 = vmatprep.subr.mxu0 0.0
        %328 = vmatpush1.msra.mxu0 0.0
        %329 = vmatprep.subr.mxu0 0.0
        %330 = vmatpush1.msra.mxu0 0.0
        %331 = vmatprep.subr.mxu0 0.0
        %332 = vmatpush1.msra.mxu0 0.0
        %333 = vmatprep.subr.mxu0 0.0
        %334 = vmatpush1.msra.mxu0 0.0
        %335 = vmatprep.subr.mxu0 0.0
        %336 = vmatpush1.msra.mxu0 0.0
        %337 = vmatprep.subr.mxu0 0.0
        %338 = vmatpush1.msra.mxu0 0.0
        %339 = vmatprep.subr.mxu0 0.0
        %340 = vmatpush1.msra.mxu0 0.0
        %341 = vmatprep.subr.mxu0 0.0
        %342 = vmatpush1.msra.mxu0 0.0
        %343 = vmatprep.subr.mxu0 0.0
        %344 = vmatpush1.msra.mxu0 0.0
        %345 = vmatprep.subr.mxu0 0.0
        %346 = vmatpush1.msra.mxu0 0.0
        %347 = vmatprep.subr.mxu0 0.0
        %348 = vmatpush1.msra.mxu0 0.0
        %349 = vmatprep.subr.mxu0 0.0
        %350 = vmatpush1.msra.mxu0 0.0
        %351 = vmatprep.subr.mxu0 0.0
        %352 = vmatpush1.msra.mxu0 0.0
        %353 = vmatprep.subr.mxu0 0.0
        %354 = vmatpush1.msra.mxu0 0.0
        %355 = vmatprep.mubr.f32.mxu0 0.0
        %356 = vmatmul.mubr.f32.gmra.mrb[0].mxu0 %v289
        %v357 = vpop.f32.mrb[0].mxu0
        %v358 = vadd.f32 0.0, %v357
        %v359 = vpop.f32.mrb[0].mxu0
        %360 = vdwg.mxu0
        %v361 = vadd.f32 %v272, %v358
        %v362 = vadd.f32 %v361, %v192
        %v363 = vtanh.pop %v362
        %vm364 = vcmask 523264
        %v366 = vsel %vm364, %v363, 0
        %368 = vmatprep.subr.mxu0 0.0
        %369 = vmatpush1.msra.mxu0 %v180
        %370 = vmatprep.subr.mxu0 0.0
        %371 = vmatpush1.msra.mxu0 %v181
        %372 = vmatprep.subr.mxu0 0.0
        %373 = vmatpush1.msra.mxu0 %v182
        %374 = vmatprep.subr.mxu0 0.0
        %375 = vmatpush1.msra.mxu0 %v183
        %376 = vmatprep.subr.mxu0 0.0
        %377 = vmatpush1.msra.mxu0 %v184
        %378 = vmatprep.subr.mxu0 0.0
        %379 = vmatpush1.msra.mxu0 %v185
        %380 = vmatprep.subr.mxu0 0.0
        %381 = vmatpush1.msra.mxu0 %v186
        %382 = vmatprep.subr.mxu0 0.0
        %383 = vmatpush1.msra.mxu0 %v187
        %384 = vmatprep.subr.mxu0 0.0
        %385 = vmatpush1.msra.mxu0 0.0
        %386 = vmatprep.subr.mxu0 0.0
        %387 = vmatpush1.msra.mxu0 0.0
        %388 = vmatprep.subr.mxu0 0.0
        %389 = vmatpush1.msra.mxu0 0.0
        %390 = vmatprep.subr.mxu0 0.0
        %391 = vmatpush1.msra.mxu0 0.0
        %392 = vmatprep.subr.mxu0 0.0
        %393 = vmatpush1.msra.mxu0 0.0
        %394 = vmatprep.subr.mxu0 0.0
        %395 = vmatpush1.msra.mxu0 0.0
        %396 = vmatprep.subr.mxu0 0.0
        %397 = vmatpush1.msra.mxu0 0.0
        %398 = vmatprep.subr.mxu0 0.0
        %399 = vmatpush1.msra.mxu0 0.0
        %400 = vmatprep.subr.mxu0 0.0
        %401 = vmatpush1.msra.mxu0 0.0
        %402 = vmatprep.subr.mxu0 0.0
        %403 = vmatpush1.msra.mxu0 0.0
        %404 = vmatprep.subr.mxu0 0.0
        %405 = vmatpush1.msra.mxu0 0.0
        %406 = vmatprep.subr.mxu0 0.0
        %407 = vmatpush1.msra.mxu0 0.0
        %408 = vmatprep.subr.mxu0 0.0
        %409 = vmatpush1.msra.mxu0 0.0
        %410 = vmatprep.subr.mxu0 0.0
        %411 = vmatpush1.msra.mxu0 0.0
        %412 = vmatprep.subr.mxu0 0.0
        %413 = vmatpush1.msra.mxu0 0.0
        %414 = vmatprep.subr.mxu0 0.0
        %415 = vmatpush1.msra.mxu0 0.0
        %416 = vmatprep.subr.mxu0 0.0
        %417 = vmatpush1.msra.mxu0 0.0
        %418 = vmatprep.subr.mxu0 0.0
        %419 = vmatpush1.msra.mxu0 0.0
        %420 = vmatprep.subr.mxu0 0.0
        %421 = vmatpush1.msra.mxu0 0.0
        %422 = vmatprep.subr.mxu0 0.0
        %423 = vmatpush1.msra.mxu0 0.0
        %424 = vmatprep.subr.mxu0 0.0
        %425 = vmatpush1.msra.mxu0 0.0
        %426 = vmatprep.subr.mxu0 0.0
        %427 = vmatpush1.msra.mxu0 0.0
        %428 = vmatprep.subr.mxu0 0.0
        %429 = vmatpush1.msra.mxu0 0.0
        %430 = vmatprep.subr.mxu0 0.0
        %431 = vmatpush1.msra.mxu0 0.0
        %432 = vmatprep.mubr.f32.mxu0 0.0
        %433 = vmatmul.mubr.f32.gmra.mrb[0].mxu0 %v366
        %v434 = vpop.f32.mrb[0].mxu0
        %v435 = vadd.f32 %v197, %v434
        %v436 = vpop.f32.mrb[0].mxu0
        %437 = vdwg.mxu0
        %v438 = vadd.f32 %v435, %v198
        %s439 = scalar_lea.vmem %s173, 8 [#allocation7]
        %440 = vst.msk [vmem:[%s439] sm:$0xff] %vm199, %v438
        %v441 = vld [vmem:[#allocation5 + $0x71] sm:$0x1]
        %v443 = vsel %vm199, %v438, 0
        %445 = vmatprep.subr.mxu0 0.0
        %446 = vmatpush1.msra.mxu0 %v174
        %447 = vmatprep.subr.mxu0 0.0
        %448 = vmatpush1.msra.mxu0 %v175
        %449 = vmatprep.subr.mxu0 0.0
        %450 = vmatpush1.msra.mxu0 %v176
        %451 = vmatprep.subr.mxu0 0.0
        %452 = vmatpush1.msra.mxu0 %v177
        %453 = vmatprep.subr.mxu0 0.0
        %454 = vmatpush1.msra.mxu0 0.0
        %455 = vmatprep.subr.mxu0 0.0
        %456 = vmatpush1.msra.mxu0 0.0
        %457 = vmatprep.subr.mxu0 0.0
        %458 = vmatpush1.msra.mxu0 0.0
        %459 = vmatprep.subr.mxu0 0.0
        %460 = vmatpush1.msra.mxu0 0.0
        %461 = vmatprep.subr.mxu0 0.0
        %462 = vmatpush1.msra.mxu0 0.0
        %463 = vmatprep.subr.mxu0 0.0
        %464 = vmatpush1.msra.mxu0 0.0
        %465 = vmatprep.subr.mxu0 0.0
        %466 = vmatpush1.msra.mxu0 0.0
        %467 = vmatprep.subr.mxu0 0.0
        %468 = vmatpush1.msra.mxu0 0.0
        %469 = vmatprep.subr.mxu0 0.0
        %470 = vmatpush1.msra.mxu0 0.0
        %471 = vmatprep.subr.mxu0 0.0
        %472 = vmatpush1.msra.mxu0 0.0
        %473 = vmatprep.subr.mxu0 0.0
        %474 = vmatpush1.msra.mxu0 0.0
        %475 = vmatprep.subr.mxu0 0.0
        %476 = vmatpush1.msra.mxu0 0.0
        %477 = vmatprep.subr.mxu0 0.0
        %478 = vmatpush1.msra.mxu0 0.0
        %479 = vmatprep.subr.mxu0 0.0
        %480 = vmatpush1.msra.mxu0 0.0
        %481 = vmatprep.subr.mxu0 0.0
        %482 = vmatpush1.msra.mxu0 0.0
        %483 = vmatprep.subr.mxu0 0.0
        %484 = vmatpush1.msra.mxu0 0.0
        %485 = vmatprep.subr.mxu0 0.0
        %486 = vmatpush1.msra.mxu0 0.0
        %487 = vmatprep.subr.mxu0 0.0
        %488 = vmatpush1.msra.mxu0 0.0
        %489 = vmatprep.subr.mxu0 0.0
        %490 = vmatpush1.msra.mxu0 0.0
        %491 = vmatprep.subr.mxu0 0.0
        %492 = vmatpush1.msra.mxu0 0.0
        %493 = vmatprep.subr.mxu0 0.0
        %494 = vmatpush1.msra.mxu0 0.0
        %495 = vmatprep.subr.mxu0 0.0
        %496 = vmatpush1.msra.mxu0 0.0
        %497 = vmatprep.subr.mxu0 0.0
        %498 = vmatpush1.msra.mxu0 0.0
        %499 = vmatprep.subr.mxu0 0.0
        %500 = vmatpush1.msra.mxu0 0.0
        %501 = vmatprep.subr.mxu0 0.0
        %502 = vmatpush1.msra.mxu0 0.0
        %503 = vmatprep.subr.mxu0 0.0
        %504 = vmatpush1.msra.mxu0 0.0
        %505 = vmatprep.subr.mxu0 0.0
        %506 = vmatpush1.msra.mxu0 0.0
        %507 = vmatprep.subr.mxu0 0.0
        %508 = vmatpush1.msra.mxu0 0.0
        %509 = vmatprep.mubr.f32.mxu0 0.0
        %510 = vmatmul.mubr.f32.gmra.mrb[0].mxu0 %v443
        %v511 = vpop.f32.mrb[0].mxu0
        %v512 = vadd.f32 0.0, %v511
        %v513 = vpop.f32.mrb[0].mxu0
        %514 = vdwg.mxu0
        %v515 = vlaneseq
        %v516 = vshrl.u32 %v515, 7
        %v517 = vsub.s32 0, %v516
        %v518 = vrot.slane %v441, %v517
        %520 = vrot.lane.b32.xlu0 %v518, 64
        %v521 = vpop.permute.xlu0 %520
        %v523 = vadd.f32 %v512, %v521
        %v524 = vtanh.pop %v523
        %526 = vrot.lane.b32.xlu0 %v524, 64
        %v527 = vpop.permute.xlu0 %526
        %v528 = vsel %vm288, %v527, 0
        %530 = vmatprep.subr.mxu0 0.0
        %531 = vmatpush1.msra.mxu0 %v178
        %532 = vmatprep.subr.mxu0 0.0
        %533 = vmatpush1.msra.mxu0 %v179
        %534 = vmatprep.subr.mxu0 0.0
        %535 = vmatpush1.msra.mxu0 0.0
        %536 = vmatprep.subr.mxu0 0.0
        %537 = vmatpush1.msra.mxu0 0.0
        %538 = vmatprep.subr.mxu0 0.0
        %539 = vmatpush1.msra.mxu0 0.0
        %540 = vmatprep.subr.mxu0 0.0
        %541 = vmatpush1.msra.mxu0 0.0
        %542 = vmatprep.subr.mxu0 0.0
        %543 = vmatpush1.msra.mxu0 0.0
        %544 = vmatprep.subr.mxu0 0.0
        %545 = vmatpush1.msra.mxu0 0.0
        %546 = vmatprep.subr.mxu0 0.0
        %547 = vmatpush1.msra.mxu0 0.0
        %548 = vmatprep.subr.mxu0 0.0
        %549 = vmatpush1.msra.mxu0 0.0
        %550 = vmatprep.subr.mxu0 0.0
        %551 = vmatpush1.msra.mxu0 0.0
        %552 = vmatprep.subr.mxu0 0.0
        %553 = vmatpush1.msra.mxu0 0.0
        %554 = vmatprep.subr.mxu0 0.0
        %555 = vmatpush1.msra.mxu0 0.0
        %556 = vmatprep.subr.mxu0 0.0
        %557 = vmatpush1.msra.mxu0 0.0
        %558 = vmatprep.subr.mxu0 0.0
        %559 = vmatpush1.msra.mxu0 0.0
        %560 = vmatprep.subr.mxu0 0.0
        %561 = vmatpush1.msra.mxu0 0.0
        %562 = vmatprep.subr.mxu0 0.0
        %563 = vmatpush1.msra.mxu0 0.0
        %564 = vmatprep.subr.mxu0 0.0
        %565 = vmatpush1.msra.mxu0 0.0
        %566 = vmatprep.subr.mxu0 0.0
        %567 = vmatpush1.msra.mxu0 0.0
        %568 = vmatprep.subr.mxu0 0.0
        %569 = vmatpush1.msra.mxu0 0.0
        %570 = vmatprep.subr.mxu0 0.0
        %571 = vmatpush1.msra.mxu0 0.0
        %572 = vmatprep.subr.mxu0 0.0
        %573 = vmatpush1.msra.mxu0 0.0
        %574 = vmatprep.subr.mxu0 0.0
        %575 = vmatpush1.msra.mxu0 0.0
        %576 = vmatprep.subr.mxu0 0.0
        %577 = vmatpush1.msra.mxu0 0.0
        %578 = vmatprep.subr.mxu0 0.0
        %579 = vmatpush1.msra.mxu0 0.0
        %580 = vmatprep.subr.mxu0 0.0
        %581 = vmatpush1.msra.mxu0 0.0
        %582 = vmatprep.subr.mxu0 0.0
        %583 = vmatpush1.msra.mxu0 0.0
        %584 = vmatprep.subr.mxu0 0.0
        %585 = vmatpush1.msra.mxu0 0.0
        %586 = vmatprep.subr.mxu0 0.0
        %587 = vmatpush1.msra.mxu0 0.0
        %588 = vmatprep.subr.mxu0 0.0
        %589 = vmatpush1.msra.mxu0 0.0
        %590 = vmatprep.subr.mxu0 0.0
        %591 = vmatpush1.msra.mxu0 0.0
        %592 = vmatprep.subr.mxu0 0.0
        %593 = vmatpush1.msra.mxu0 0.0
        %594 = vmatprep.mubr.f32.mxu0 0.0
        %595 = vmatmul.mubr.f32.gmra.mrb[0].mxu0 %v528
        %v596 = vpop.f32.mrb[0].mxu0
        %v597 = vadd.f32 0.0, %v596
        %v598 = vpop.f32.mrb[0].mxu0
        %599 = vdwg.mxu0
        %v600 = vadd.f32 %v512, %v597
        %v601 = vadd.f32 %v600, %v192
        %v602 = vtanh.pop %v601
        %v604 = vsel %vm364, %v602, 0
        %606 = vmatprep.subr.mxu0 0.0
        %607 = vmatpush1.msra.mxu0 %v180
        %608 = vmatprep.subr.mxu0 0.0
        %609 = vmatpush1.msra.mxu0 %v181
        %610 = vmatprep.subr.mxu0 0.0
        %611 = vmatpush1.msra.mxu0 %v182
        %612 = vmatprep.subr.mxu0 0.0
        %613 = vmatpush1.msra.mxu0 %v183
        %614 = vmatprep.subr.mxu0 0.0
        %615 = vmatpush1.msra.mxu0 %v184
        %616 = vmatprep.subr.mxu0 0.0
        %617 = vmatpush1.msra.mxu0 %v185
        %618 = vmatprep.subr.mxu0 0.0
        %619 = vmatpush1.msra.mxu0 %v186
        %620 = vmatprep.subr.mxu0 0.0
        %621 = vmatpush1.msra.mxu0 %v187
        %622 = vmatprep.subr.mxu0 0.0
        %623 = vmatpush1.msra.mxu0 0.0
        %624 = vmatprep.subr.mxu0 0.0
        %625 = vmatpush1.msra.mxu0 0.0
        %626 = vmatprep.subr.mxu0 0.0
        %627 = vmatpush1.msra.mxu0 0.0
        %628 = vmatprep.subr.mxu0 0.0
        %629 = vmatpush1.msra.mxu0 0.0
        %630 = vmatprep.subr.mxu0 0.0
        %631 = vmatpush1.msra.mxu0 0.0
        %632 = vmatprep.subr.mxu0 0.0
        %633 = vmatpush1.msra.mxu0 0.0
        %634 = vmatprep.subr.mxu0 0.0
        %635 = vmatpush1.msra.mxu0 0.0
        %636 = vmatprep.subr.mxu0 0.0
        %637 = vmatpush1.msra.mxu0 0.0
        %638 = vmatprep.subr.mxu0 0.0
        %639 = vmatpush1.msra.mxu0 0.0
        %640 = vmatprep.subr.mxu0 0.0
        %641 = vmatpush1.msra.mxu0 0.0
        %642 = vmatprep.subr.mxu0 0.0
        %643 = vmatpush1.msra.mxu0 0.0
        %644 = vmatprep.subr.mxu0 0.0
        %645 = vmatpush1.msra.mxu0 0.0
        %646 = vmatprep.subr.mxu0 0.0
        %647 = vmatpush1.msra.mxu0 0.0
        %648 = vmatprep.subr.mxu0 0.0
        %649 = vmatpush1.msra.mxu0 0.0
        %650 = vmatprep.subr.mxu0 0.0
        %651 = vmatpush1.msra.mxu0 0.0
        %652 = vmatprep.subr.mxu0 0.0
        %653 = vmatpush1.msra.mxu0 0.0
        %654 = vmatprep.subr.mxu0 0.0
        %655 = vmatpush1.msra.mxu0 0.0
        %656 = vmatprep.subr.mxu0 0.0
        %657 = vmatpush1.msra.mxu0 0.0
        %658 = vmatprep.subr.mxu0 0.0
        %659 = vmatpush1.msra.mxu0 0.0
        %660 = vmatprep.subr.mxu0 0.0
        %661 = vmatpush1.msra.mxu0 0.0
        %662 = vmatprep.subr.mxu0 0.0
        %663 = vmatpush1.msra.mxu0 0.0
        %664 = vmatprep.subr.mxu0 0.0
        %665 = vmatpush1.msra.mxu0 0.0
        %666 = vmatprep.subr.mxu0 0.0
        %667 = vmatpush1.msra.mxu0 0.0
        %668 = vmatprep.subr.mxu0 0.0
        %669 = vmatpush1.msra.mxu0 0.0
        %670 = vmatprep.mubr.f32.mxu0 0.0
        %671 = vmatmul.mubr.f32.gmra.mrb[0].mxu0 %v604
        %v672 = vpop.f32.mrb[0].mxu0
        %v673 = vadd.f32 %v197, %v672
        %v674 = vpop.f32.mrb[0].mxu0
        %675 = vdwg.mxu0
        %v676 = vadd.f32 %v673, %v438
        %s677 = scalar_lea.vmem %s173, 16 [#allocation7]
        %678 = vst.msk [vmem:[%s677] sm:$0xff] %vm199, %v676
        %v679 = vld [vmem:[#allocation5 + $0x72] sm:$0x1]
        %v681 = vsel %vm199, %v676, 0
        %683 = vmatprep.subr.mxu0 0.0
        %684 = vmatpush1.msra.mxu0 %v174
        %685 = vmatprep.subr.mxu0 0.0
        %686 = vmatpush1.msra.mxu0 %v175
        %687 = vmatprep.subr.mxu0 0.0
        %688 = vmatpush1.msra.mxu0 %v176
        %689 = vmatprep.subr.mxu0 0.0
        %690 = vmatpush1.msra.mxu0 %v177
        %691 = vmatprep.subr.mxu0 0.0
        %692 = vmatpush1.msra.mxu0 0.0
        %693 = vmatprep.subr.mxu0 0.0
        %694 = vmatpush1.msra.mxu0 0.0
        %695 = vmatprep.subr.mxu0 0.0
        %696 = vmatpush1.msra.mxu0 0.0
        %697 = vmatprep.subr.mxu0 0.0
        %698 = vmatpush1.msra.mxu0 0.0
        %699 = vmatprep.subr.mxu0 0.0
        %700 = vmatpush1.msra.mxu0 0.0
        %701 = vmatprep.subr.mxu0 0.0
        %702 = vmatpush1.msra.mxu0 0.0
        %703 = vmatprep.subr.mxu0 0.0
        %704 = vmatpush1.msra.mxu0 0.0
        %705 = vmatprep.subr.mxu0 0.0
        %706 = vmatpush1.msra.mxu0 0.0
        %707 = vmatprep.subr.mxu0 0.0
        %708 = vmatpush1.msra.mxu0 0.0
        %709 = vmatprep.subr.mxu0 0.0
        %710 = vmatpush1.msra.mxu0 0.0
        %711 = vmatprep.subr.mxu0 0.0
        %712 = vmatpush1.msra.mxu0 0.0
        %713 = vmatprep.subr.mxu0 0.0
        %714 = vmatpush1.msra.mxu0 0.0
        %715 = vmatprep.subr.mxu0 0.0
        %716 = vmatpush1.msra.mxu0 0.0
        %717 = vmatprep.subr.mxu0 0.0
        %718 = vmatpush1.msra.mxu0 0.0
        %719 = vmatprep.subr.mxu0 0.0
        %720 = vmatpush1.msra.mxu0 0.0
        %721 = vmatprep.subr.mxu0 0.0
        %722 = vmatpush1.msra.mxu0 0.0
        %723 = vmatprep.subr.mxu0 0.0
        %724 = vmatpush1.msra.mxu0 0.0
        %725 = vmatprep.subr.mxu0 0.0
        %726 = vmatpush1.msra.mxu0 0.0
        %727 = vmatprep.subr.mxu0 0.0
        %728 = vmatpush1.msra.mxu0 0.0
        %729 = vmatprep.subr.mxu0 0.0
        %730 = vmatpush1.msra.mxu0 0.0
        %731 = vmatprep.subr.mxu0 0.0
        %732 = vmatpush1.msra.mxu0 0.0
        %733 = vmatprep.subr.mxu0 0.0
        %734 = vmatpush1.msra.mxu0 0.0
        %735 = vmatprep.subr.mxu0 0.0
        %736 = vmatpush1.msra.mxu0 0.0
        %737 = vmatprep.subr.mxu0 0.0
        %738 = vmatpush1.msra.mxu0 0.0
        %739 = vmatprep.subr.mxu0 0.0
        %740 = vmatpush1.msra.mxu0 0.0
        %741 = vmatprep.subr.mxu0 0.0
        %742 = vmatpush1.msra.mxu0 0.0
        %743 = vmatprep.subr.mxu0 0.0
        %744 = vmatpush1.msra.mxu0 0.0
        %745 = vmatprep.subr.mxu0 0.0
        %746 = vmatpush1.msra.mxu0 0.0
        %747 = vmatprep.mubr.f32.mxu0 0.0
        %748 = vmatmul.mubr.f32.gmra.mrb[0].mxu0 %v681
        %v749 = vpop.f32.mrb[0].mxu0
        %v750 = vadd.f32 0.0, %v749
        %v751 = vpop.f32.mrb[0].mxu0
        %752 = vdwg.mxu0
        %v753 = vlaneseq
        %v754 = vshrl.u32 %v753, 7
        %v755 = vsub.s32 0, %v754
        %v756 = vrot.slane %v679, %v755
        %758 = vrot.lane.b32.xlu0 %v756, 64
        %v759 = vpop.permute.xlu0 %758
        %v761 = vadd.f32 %v750, %v759
        %v762 = vtanh.pop %v761
        %764 = vrot.lane.b32.xlu0 %v762, 64
        %v765 = vpop.permute.xlu0 %764
        %v766 = vsel %vm288, %v765, 0
        %768 = vmatprep.subr.mxu0 0.0
        %769 = vmatpush1.msra.mxu0 %v178
        %770 = vmatprep.subr.mxu0 0.0
        %771 = vmatpush1.msra.mxu0 %v179
        %772 = vmatprep.subr.mxu0 0.0
        %773 = vmatpush1.msra.mxu0 0.0
        %774 = vmatprep.subr.mxu0 0.0
        %775 = vmatpush1.msra.mxu0 0.0
        %776 = vmatprep.subr.mxu0 0.0
        %777 = vmatpush1.msra.mxu0 0.0
        %778 = vmatprep.subr.mxu0 0.0
        %779 = vmatpush1.msra.mxu0 0.0
        %780 = vmatprep.subr.mxu0 0.0
        %781 = vmatpush1.msra.mxu0 0.0
        %782 = vmatprep.subr.mxu0 0.0
        %783 = vmatpush1.msra.mxu0 0.0
        %784 = vmatprep.subr.mxu0 0.0
        %785 = vmatpush1.msra.mxu0 0.0
        %786 = vmatprep.subr.mxu0 0.0
        %787 = vmatpush1.msra.mxu0 0.0
        %788 = vmatprep.subr.mxu0 0.0
        %789 = vmatpush1.msra.mxu0 0.0
        %790 = vmatprep.subr.mxu0 0.0
        %791 = vmatpush1.msra.mxu0 0.0
        %792 = vmatprep.subr.mxu0 0.0
        %793 = vmatpush1.msra.mxu0 0.0
        %794 = vmatprep.subr.mxu0 0.0
        %795 = vmatpush1.msra.mxu0 0.0
        %796 = vmatprep.subr.mxu0 0.0
        %797 = vmatpush1.msra.mxu0 0.0
        %798 = vmatprep.subr.mxu0 0.0
        %799 = vmatpush1.msra.mxu0 0.0
        %800 = vmatprep.subr.mxu0 0.0
        %801 = vmatpush1.msra.mxu0 0.0
        %802 = vmatprep.subr.mxu0 0.0
        %803 = vmatpush1.msra.mxu0 0.0
        %804 = vmatprep.subr.mxu0 0.0
        %805 = vmatpush1.msra.mxu0 0.0
        %806 = vmatprep.subr.mxu0 0.0
        %807 = vmatpush1.msra.mxu0 0.0
        %808 = vmatprep.subr.mxu0 0.0
        %809 = vmatpush1.msra.mxu0 0.0
        %810 = vmatprep.subr.mxu0 0.0
        %811 = vmatpush1.msra.mxu0 0.0
        %812 = vmatprep.subr.mxu0 0.0
        %813 = vmatpush1.msra.mxu0 0.0
        %814 = vmatprep.subr.mxu0 0.0
        %815 = vmatpush1.msra.mxu0 0.0
        %816 = vmatprep.subr.mxu0 0.0
        %817 = vmatpush1.msra.mxu0 0.0
        %818 = vmatprep.subr.mxu0 0.0
        %819 = vmatpush1.msra.mxu0 0.0
        %820 = vmatprep.subr.mxu0 0.0
        %821 = vmatpush1.msra.mxu0 0.0
        %822 = vmatprep.subr.mxu0 0.0
        %823 = vmatpush1.msra.mxu0 0.0
        %824 = vmatprep.subr.mxu0 0.0
        %825 = vmatpush1.msra.mxu0 0.0
        %826 = vmatprep.subr.mxu0 0.0
        %827 = vmatpush1.msra.mxu0 0.0
        %828 = vmatprep.subr.mxu0 0.0
        %829 = vmatpush1.msra.mxu0 0.0
        %830 = vmatprep.subr.mxu0 0.0
        %831 = vmatpush1.msra.mxu0 0.0
        %832 = vmatprep.mubr.f32.mxu0 0.0
        %833 = vmatmul.mubr.f32.gmra.mrb[0].mxu0 %v766
        %v834 = vpop.f32.mrb[0].mxu0
        %v835 = vadd.f32 0.0, %v834
        %v836 = vpop.f32.mrb[0].mxu0
        %837 = vdwg.mxu0
        %v838 = vadd.f32 %v750, %v835
        %v839 = vadd.f32 %v838, %v192
        %v840 = vtanh.pop %v839
        %v842 = vsel %vm364, %v840, 0
        %844 = vmatprep.subr.mxu0 0.0
        %845 = vmatpush1.msra.mxu0 %v180
        %846 = vmatprep.subr.mxu0 0.0
        %847 = vmatpush1.msra.mxu0 %v181
        %848 = vmatprep.subr.mxu0 0.0
        %849 = vmatpush1.msra.mxu0 %v182
        %850 = vmatprep.subr.mxu0 0.0
        %851 = vmatpush1.msra.mxu0 %v183
        %852 = vmatprep.subr.mxu0 0.0
        %853 = vmatpush1.msra.mxu0 %v184
        %854 = vmatprep.subr.mxu0 0.0
        %855 = vmatpush1.msra.mxu0 %v185
        %856 = vmatprep.subr.mxu0 0.0
        %857 = vmatpush1.msra.mxu0 %v186
        %858 = vmatprep.subr.mxu0 0.0
        %859 = vmatpush1.msra.mxu0 %v187
        %860 = vmatprep.subr.mxu0 0.0
        %861 = vmatpush1.msra.mxu0 0.0
        %862 = vmatprep.subr.mxu0 0.0
        %863 = vmatpush1.msra.mxu0 0.0
        %864 = vmatprep.subr.mxu0 0.0
        %865 = vmatpush1.msra.mxu0 0.0
        %866 = vmatprep.subr.mxu0 0.0
        %867 = vmatpush1.msra.mxu0 0.0
        %868 = vmatprep.subr.mxu0 0.0
        %869 = vmatpush1.msra.mxu0 0.0
        %870 = vmatprep.subr.mxu0 0.0
        %871 = vmatpush1.msra.mxu0 0.0
        %872 = vmatprep.subr.mxu0 0.0
        %873 = vmatpush1.msra.mxu0 0.0
        %874 = vmatprep.subr.mxu0 0.0
        %875 = vmatpush1.msra.mxu0 0.0
        %876 = vmatprep.subr.mxu0 0.0
        %877 = vmatpush1.msra.mxu0 0.0
        %878 = vmatprep.subr.mxu0 0.0
        %879 = vmatpush1.msra.mxu0 0.0
        %880 = vmatprep.subr.mxu0 0.0
        %881 = vmatpush1.msra.mxu0 0.0
        %882 = vmatprep.subr.mxu0 0.0
        %883 = vmatpush1.msra.mxu0 0.0
        %884 = vmatprep.subr.mxu0 0.0
        %885 = vmatpush1.msra.mxu0 0.0
        %886 = vmatprep.subr.mxu0 0.0
        %887 = vmatpush1.msra.mxu0 0.0
        %888 = vmatprep.subr.mxu0 0.0
        %889 = vmatpush1.msra.mxu0 0.0
        %890 = vmatprep.subr.mxu0 0.0
        %891 = vmatpush1.msra.mxu0 0.0
        %892 = vmatprep.subr.mxu0 0.0
        %893 = vmatpush1.msra.mxu0 0.0
        %894 = vmatprep.subr.mxu0 0.0
        %895 = vmatpush1.msra.mxu0 0.0
        %896 = vmatprep.subr.mxu0 0.0
        %897 = vmatpush1.msra.mxu0 0.0
        %898 = vmatprep.subr.mxu0 0.0
        %899 = vmatpush1.msra.mxu0 0.0
        %900 = vmatprep.subr.mxu0 0.0
        %901 = vmatpush1.msra.mxu0 0.0
        %902 = vmatprep.subr.mxu0 0.0
        %903 = vmatpush1.msra.mxu0 0.0
        %904 = vmatprep.subr.mxu0 0.0
        %905 = vmatpush1.msra.mxu0 0.0
        %906 = vmatprep.subr.mxu0 0.0
        %907 = vmatpush1.msra.mxu0 0.0
        %908 = vmatprep.mubr.f32.mxu0 0.0
        %909 = vmatmul.mubr.f32.gmra.mrb[0].mxu0 %v842
        %v910 = vpop.f32.mrb[0].mxu0
        %v911 = vadd.f32 %v197, %v910
        %v912 = vpop.f32.mrb[0].mxu0
        %913 = vdwg.mxu0
        %v914 = vadd.f32 %v911, %v676
        %s915 = scalar_lea.vmem %s173, 24 [#allocation7]
        %916 = vst.msk [vmem:[%s915] sm:$0xff] %vm199, %v914
        %v917 = vld [vmem:[#allocation5 + $0x73] sm:$0x1]
        %v919 = vsel %vm199, %v914, 0
        %921 = vmatprep.subr.mxu0 0.0
        %922 = vmatpush1.msra.mxu0 %v174
        %923 = vmatprep.subr.mxu0 0.0
        %924 = vmatpush1.msra.mxu0 %v175
        %925 = vmatprep.subr.mxu0 0.0
        %926 = vmatpush1.msra.mxu0 %v176
        %927 = vmatprep.subr.mxu0 0.0
        %928 = vmatpush1.msra.mxu0 %v177
        %929 = vmatprep.subr.mxu0 0.0
        %930 = vmatpush1.msra.mxu0 0.0
        %931 = vmatprep.subr.mxu0 0.0
        %932 = vmatpush1.msra.mxu0 0.0
        %933 = vmatprep.subr.mxu0 0.0
        %934 = vmatpush1.msra.mxu0 0.0
        %935 = vmatprep.subr.mxu0 0.0
        %936 = vmatpush1.msra.mxu0 0.0
        %937 = vmatprep.subr.mxu0 0.0
        %938 = vmatpush1.msra.mxu0 0.0
        %939 = vmatprep.subr.mxu0 0.0
        %940 = vmatpush1.msra.mxu0 0.0
        %941 = vmatprep.subr.mxu0 0.0
        %942 = vmatpush1.msra.mxu0 0.0
        %943 = vmatprep.subr.mxu0 0.0
        %944 = vmatpush1.msra.mxu0 0.0
        %945 = vmatprep.subr.mxu0 0.0
        %946 = vmatpush1.msra.mxu0 0.0
        %947 = vmatprep.subr.mxu0 0.0
        %948 = vmatpush1.msra.mxu0 0.0
        %949 = vmatprep.subr.mxu0 0.0
        %950 = vmatpush1.msra.mxu0 0.0
        %951 = vmatprep.subr.mxu0 0.0
        %952 = vmatpush1.msra.mxu0 0.0
        %953 = vmatprep.subr.mxu0 0.0
        %954 = vmatpush1.msra.mxu0 0.0
        %955 = vmatprep.subr.mxu0 0.0
        %956 = vmatpush1.msra.mxu0 0.0
        %957 = vmatprep.subr.mxu0 0.0
        %958 = vmatpush1.msra.mxu0 0.0
        %959 = vmatprep.subr.mxu0 0.0
        %960 = vmatpush1.msra.mxu0 0.0
        %961 = vmatprep.subr.mxu0 0.0
        %962 = vmatpush1.msra.mxu0 0.0
        %963 = vmatprep.subr.mxu0 0.0
        %964 = vmatpush1.msra.mxu0 0.0
        %965 = vmatprep.subr.mxu0 0.0
        %966 = vmatpush1.msra.mxu0 0.0
        %967 = vmatprep.subr.mxu0 0.0
        %968 = vmatpush1.msra.mxu0 0.0
        %969 = vmatprep.subr.mxu0 0.0
        %970 = vmatpush1.msra.mxu0 0.0
        %971 = vmatprep.subr.mxu0 0.0
        %972 = vmatpush1.msra.mxu0 0.0
        %973 = vmatprep.subr.mxu0 0.0
        %974 = vmatpush1.msra.mxu0 0.0
        %975 = vmatprep.subr.mxu0 0.0
        %976 = vmatpush1.msra.mxu0 0.0
        %977 = vmatprep.subr.mxu0 0.0
        %978 = vmatpush1.msra.mxu0 0.0
        %979 = vmatprep.subr.mxu0 0.0
        %980 = vmatpush1.msra.mxu0 0.0
        %981 = vmatprep.subr.mxu0 0.0
        %982 = vmatpush1.msra.mxu0 0.0
        %983 = vmatprep.subr.mxu0 0.0
        %984 = vmatpush1.msra.mxu0 0.0
        %985 = vmatprep.mubr.f32.mxu0 0.0
        %986 = vmatmul.mubr.f32.gmra.mrb[0].mxu0 %v919
        %v987 = vpop.f32.mrb[0].mxu0
        %v988 = vadd.f32 0.0, %v987
        %v989 = vpop.f32.mrb[0].mxu0
        %990 = vdwg.mxu0
        %v991 = vlaneseq
        %v992 = vshrl.u32 %v991, 7
        %v993 = vsub.s32 0, %v992
        %v994 = vrot.slane %v917, %v993
        %996 = vrot.lane.b32.xlu0 %v994, 64
        %v997 = vpop.permute.xlu0 %996
        %v999 = vadd.f32 %v988, %v997
        %v1000 = vtanh.pop %v999
        %1002 = vrot.lane.b32.xlu0 %v1000, 64
        %v1003 = vpop.permute.xlu0 %1002
        %v1004 = vsel %vm288, %v1003, 0
        %1006 = vmatprep.subr.mxu0 0.0
        %1007 = vmatpush1.msra.mxu0 %v178
        %1008 = vmatprep.subr.mxu0 0.0
        %1009 = vmatpush1.msra.mxu0 %v179
        %1010 = vmatprep.subr.mxu0 0.0
        %1011 = vmatpush1.msra.mxu0 0.0
        %1012 = vmatprep.subr.mxu0 0.0
        %1013 = vmatpush1.msra.mxu0 0.0
        %1014 = vmatprep.subr.mxu0 0.0
        %1015 = vmatpush1.msra.mxu0 0.0
        %1016 = vmatprep.subr.mxu0 0.0
        %1017 = vmatpush1.msra.mxu0 0.0
        %1018 = vmatprep.subr.mxu0 0.0
        %1019 = vmatpush1.msra.mxu0 0.0
        %1020 = vmatprep.subr.mxu0 0.0
        %1021 = vmatpush1.msra.mxu0 0.0
        %1022 = vmatprep.subr.mxu0 0.0
        %1023 = vmatpush1.msra.mxu0 0.0
        %1024 = vmatprep.subr.mxu0 0.0
        %1025 = vmatpush1.msra.mxu0 0.0
        %1026 = vmatprep.subr.mxu0 0.0
        %1027 = vmatpush1.msra.mxu0 0.0
        %1028 = vmatprep.subr.mxu0 0.0
        %1029 = vmatpush1.msra.mxu0 0.0
        %1030 = vmatprep.subr.mxu0 0.0
        %1031 = vmatpush1.msra.mxu0 0.0
        %1032 = vmatprep.subr.mxu0 0.0
        %1033 = vmatpush1.msra.mxu0 0.0
        %1034 = vmatprep.subr.mxu0 0.0
        %1035 = vmatpush1.msra.mxu0 0.0
        %1036 = vmatprep.subr.mxu0 0.0
        %1037 = vmatpush1.msra.mxu0 0.0
        %1038 = vmatprep.subr.mxu0 0.0
        %1039 = vmatpush1.msra.mxu0 0.0
        %1040 = vmatprep.subr.mxu0 0.0
        %1041 = vmatpush1.msra.mxu0 0.0
        %1042 = vmatprep.subr.mxu0 0.0
        %1043 = vmatpush1.msra.mxu0 0.0
        %1044 = vmatprep.subr.mxu0 0.0
        %1045 = vmatpush1.msra.mxu0 0.0
        %1046 = vmatprep.subr.mxu0 0.0
        %1047 = vmatpush1.msra.mxu0 0.0
        %1048 = vmatprep.subr.mxu0 0.0
        %1049 = vmatpush1.msra.mxu0 0.0
        %1050 = vmatprep.subr.mxu0 0.0
        %1051 = vmatpush1.msra.mxu0 0.0
        %1052 = vmatprep.subr.mxu0 0.0
        %1053 = vmatpush1.msra.mxu0 0.0
        %1054 = vmatprep.subr.mxu0 0.0
        %1055 = vmatpush1.msra.mxu0 0.0
        %1056 = vmatprep.subr.mxu0 0.0
        %1057 = vmatpush1.msra.mxu0 0.0
        %1058 = vmatprep.subr.mxu0 0.0
        %1059 = vmatpush1.msra.mxu0 0.0
        %1060 = vmatprep.subr.mxu0 0.0
        %1061 = vmatpush1.msra.mxu0 0.0
        %1062 = vmatprep.subr.mxu0 0.0
        %1063 = vmatpush1.msra.mxu0 0.0
        %1064 = vmatprep.subr.mxu0 0.0
        %1065 = vmatpush1.msra.mxu0 0.0
        %1066 = vmatprep.subr.mxu0 0.0
        %1067 = vmatpush1.msra.mxu0 0.0
        %1068 = vmatprep.subr.mxu0 0.0
        %1069 = vmatpush1.msra.mxu0 0.0
        %1070 = vmatprep.mubr.f32.mxu0 0.0
        %1071 = vmatmul.mubr.f32.gmra.mrb[0].mxu0 %v1004
        %v1072 = vpop.f32.mrb[0].mxu0
        %v1073 = vadd.f32 0.0, %v1072
        %v1074 = vpop.f32.mrb[0].mxu0
        %1075 = vdwg.mxu0
        %v1076 = vadd.f32 %v988, %v1073
        %v1077 = vadd.f32 %v1076, %v192
        %v1078 = vtanh.pop %v1077
        %v1080 = vsel %vm364, %v1078, 0
        %1082 = vmatprep.subr.mxu0 0.0
        %1083 = vmatpush1.msra.mxu0 %v180
        %1084 = vmatprep.subr.mxu0 0.0
        %1085 = vmatpush1.msra.mxu0 %v181
        %1086 = vmatprep.subr.mxu0 0.0
        %1087 = vmatpush1.msra.mxu0 %v182
        %1088 = vmatprep.subr.mxu0 0.0
        %1089 = vmatpush1.msra.mxu0 %v183
        %1090 = vmatprep.subr.mxu0 0.0
        %1091 = vmatpush1.msra.mxu0 %v184
        %1092 = vmatprep.subr.mxu0 0.0
        %1093 = vmatpush1.msra.mxu0 %v185
        %1094 = vmatprep.subr.mxu0 0.0
        %1095 = vmatpush1.msra.mxu0 %v186
        %1096 = vmatprep.subr.mxu0 0.0
        %1097 = vmatpush1.msra.mxu0 %v187
        %1098 = vmatprep.subr.mxu0 0.0
        %1099 = vmatpush1.msra.mxu0 0.0
        %1100 = vmatprep.subr.mxu0 0.0
        %1101 = vmatpush1.msra.mxu0 0.0
        %1102 = vmatprep.subr.mxu0 0.0
        %1103 = vmatpush1.msra.mxu0 0.0
        %1104 = vmatprep.subr.mxu0 0.0
        %1105 = vmatpush1.msra.mxu0 0.0
        %1106 = vmatprep.subr.mxu0 0.0
        %1107 = vmatpush1.msra.mxu0 0.0
        %1108 = vmatprep.subr.mxu0 0.0
        %1109 = vmatpush1.msra.mxu0 0.0
        %1110 = vmatprep.subr.mxu0 0.0
        %1111 = vmatpush1.msra.mxu0 0.0
        %1112 = vmatprep.subr.mxu0 0.0
        %1113 = vmatpush1.msra.mxu0 0.0
        %1114 = vmatprep.subr.mxu0 0.0
        %1115 = vmatpush1.msra.mxu0 0.0
        %1116 = vmatprep.subr.mxu0 0.0
        %1117 = vmatpush1.msra.mxu0 0.0
        %1118 = vmatprep.subr.mxu0 0.0
        %1119 = vmatpush1.msra.mxu0 0.0
        %1120 = vmatprep.subr.mxu0 0.0
        %1121 = vmatpush1.msra.mxu0 0.0
        %1122 = vmatprep.subr.mxu0 0.0
        %1123 = vmatpush1.msra.mxu0 0.0
        %1124 = vmatprep.subr.mxu0 0.0
        %1125 = vmatpush1.msra.mxu0 0.0
        %1126 = vmatprep.subr.mxu0 0.0
        %1127 = vmatpush1.msra.mxu0 0.0
        %1128 = vmatprep.subr.mxu0 0.0
        %1129 = vmatpush1.msra.mxu0 0.0
        %1130 = vmatprep.subr.mxu0 0.0
        %1131 = vmatpush1.msra.mxu0 0.0
        %1132 = vmatprep.subr.mxu0 0.0
        %1133 = vmatpush1.msra.mxu0 0.0
        %1134 = vmatprep.subr.mxu0 0.0
        %1135 = vmatpush1.msra.mxu0 0.0
        %1136 = vmatprep.subr.mxu0 0.0
        %1137 = vmatpush1.msra.mxu0 0.0
        %1138 = vmatprep.subr.mxu0 0.0
        %1139 = vmatpush1.msra.mxu0 0.0
        %1140 = vmatprep.subr.mxu0 0.0
        %1141 = vmatpush1.msra.mxu0 0.0
        %1142 = vmatprep.subr.mxu0 0.0
        %1143 = vmatpush1.msra.mxu0 0.0
        %1144 = vmatprep.subr.mxu0 0.0
        %1145 = vmatpush1.msra.mxu0 0.0
        %1146 = vmatprep.mubr.f32.mxu0 0.0
        %1147 = vmatmul.mubr.f32.gmra.mrb[0].mxu0 %v1080
        %v1148 = vpop.f32.mrb[0].mxu0
        %v1149 = vadd.f32 %v197, %v1148
        %v1150 = vpop.f32.mrb[0].mxu0
        %1151 = vdwg.mxu0
        %v1152 = vadd.f32 %v1149, %v914
        %s1153 = scalar_lea.vmem %s173, 32 [#allocation7]
        %1154 = vst.msk [vmem:[%s1153] sm:$0xff] %vm199, %v1152
        %v1155 = vld [vmem:[#allocation5 + $0x74] sm:$0x1]
        %v1157 = vsel %vm199, %v1152, 0
        %1159 = vmatprep.subr.mxu0 0.0
        %1160 = vmatpush1.msra.mxu0 %v174
        %1161 = vmatprep.subr.mxu0 0.0
        %1162 = vmatpush1.msra.mxu0 %v175
        %1163 = vmatprep.subr.mxu0 0.0
        %1164 = vmatpush1.msra.mxu0 %v176
        %1165 = vmatprep.subr.mxu0 0.0
        %1166 = vmatpush1.msra.mxu0 %v177
        %1167 = vmatprep.subr.mxu0 0.0
        %1168 = vmatpush1.msra.mxu0 0.0
        %1169 = vmatprep.subr.mxu0 0.0
        %1170 = vmatpush1.msra.mxu0 0.0
        %1171 = vmatprep.subr.mxu0 0.0
        %1172 = vmatpush1.msra.mxu0 0.0
        %1173 = vmatprep.subr.mxu0 0.0
        %1174 = vmatpush1.msra.mxu0 0.0
        %1175 = vmatprep.subr.mxu0 0.0
        %1176 = vmatpush1.msra.mxu0 0.0
        %1177 = vmatprep.subr.mxu0 0.0
        %1178 = vmatpush1.msra.mxu0 0.0
        %1179 = vmatprep.subr.mxu0 0.0
        %1180 = vmatpush1.msra.mxu0 0.0
        %1181 = vmatprep.subr.mxu0 0.0
        %1182 = vmatpush1.msra.mxu0 0.0
        %1183 = vmatprep.subr.mxu0 0.0
        %1184 = vmatpush1.msra.mxu0 0.0
        %1185 = vmatprep.subr.mxu0 0.0
        %1186 = vmatpush1.msra.mxu0 0.0
        %1187 = vmatprep.subr.mxu0 0.0
        %1188 = vmatpush1.msra.mxu0 0.0
        %1189 = vmatprep.subr.mxu0 0.0
        %1190 = vmatpush1.msra.mxu0 0.0
        %1191 = vmatprep.subr.mxu0 0.0
        %1192 = vmatpush1.msra.mxu0 0.0
        %1193 = vmatprep.subr.mxu0 0.0
        %1194 = vmatpush1.msra.mxu0 0.0
        %1195 = vmatprep.subr.mxu0 0.0
        %1196 = vmatpush1.msra.mxu0 0.0
        %1197 = vmatprep.subr.mxu0 0.0
        %1198 = vmatpush1.msra.mxu0 0.0
        %1199 = vmatprep.subr.mxu0 0.0
        %1200 = vmatpush1.msra.mxu0 0.0
        %1201 = vmatprep.subr.mxu0 0.0
        %1202 = vmatpush1.msra.mxu0 0.0
        %1203 = vmatprep.subr.mxu0 0.0
        %1204 = vmatpush1.msra.mxu0 0.0
        %1205 = vmatprep.subr.mxu0 0.0
        %1206 = vmatpush1.msra.mxu0 0.0
        %1207 = vmatprep.subr.mxu0 0.0
        %1208 = vmatpush1.msra.mxu0 0.0
        %1209 = vmatprep.subr.mxu0 0.0
        %1210 = vmatpush1.msra.mxu0 0.0
        %1211 = vmatprep.subr.mxu0 0.0
        %1212 = vmatpush1.msra.mxu0 0.0
        %1213 = vmatprep.subr.mxu0 0.0
        %1214 = vmatpush1.msra.mxu0 0.0
        %1215 = vmatprep.subr.mxu0 0.0
        %1216 = vmatpush1.msra.mxu0 0.0
        %1217 = vmatprep.subr.mxu0 0.0
        %1218 = vmatpush1.msra.mxu0 0.0
        %1219 = vmatprep.subr.mxu0 0.0
        %1220 = vmatpush1.msra.mxu0 0.0
        %1221 = vmatprep.subr.mxu0 0.0
        %1222 = vmatpush1.msra.mxu0 0.0
        %1223 = vmatprep.mubr.f32.mxu0 0.0
        %1224 = vmatmul.mubr.f32.gmra.mrb[0].mxu0 %v1157
        %v1225 = vpop.f32.mrb[0].mxu0
        %v1226 = vadd.f32 0.0, %v1225
        %v1227 = vpop.f32.mrb[0].mxu0
        %1228 = vdwg.mxu0
        %v1229 = vlaneseq
        %v1230 = vshrl.u32 %v1229, 7
        %v1231 = vsub.s32 0, %v1230
        %v1232 = vrot.slane %v1155, %v1231
        %1234 = vrot.lane.b32.xlu0 %v1232, 64
        %v1235 = vpop.permute.xlu0 %1234
        %v1237 = vadd.f32 %v1226, %v1235
        %v1238 = vtanh.pop %v1237
        %1240 = vrot.lane.b32.xlu0 %v1238, 64
        %v1241 = vpop.permute.xlu0 %1240
        %v1242 = vsel %vm288, %v1241, 0
        %1244 = vmatprep.subr.mxu0 0.0
        %1245 = vmatpush1.msra.mxu0 %v178
        %1246 = vmatprep.subr.mxu0 0.0
        %1247 = vmatpush1.msra.mxu0 %v179
        %1248 = vmatprep.subr.mxu0 0.0
        %1249 = vmatpush1.msra.mxu0 0.0
        %1250 = vmatprep.subr.mxu0 0.0
        %1251 = vmatpush1.msra.mxu0 0.0
        %1252 = vmatprep.subr.mxu0 0.0
        %1253 = vmatpush1.msra.mxu0 0.0
        %1254 = vmatprep.subr.mxu0 0.0
        %1255 = vmatpush1.msra.mxu0 0.0
        %1256 = vmatprep.subr.mxu0 0.0
        %1257 = vmatpush1.msra.mxu0 0.0
        %1258 = vmatprep.subr.mxu0 0.0
        %1259 = vmatpush1.msra.mxu0 0.0
        %1260 = vmatprep.subr.mxu0 0.0
        %1261 = vmatpush1.msra.mxu0 0.0
        %1262 = vmatprep.subr.mxu0 0.0
        %1263 = vmatpush1.msra.mxu0 0.0
        %1264 = vmatprep.subr.mxu0 0.0
        %1265 = vmatpush1.msra.mxu0 0.0
        %1266 = vmatprep.subr.mxu0 0.0
        %1267 = vmatpush1.msra.mxu0 0.0
        %1268 = vmatprep.subr.mxu0 0.0
        %1269 = vmatpush1.msra.mxu0 0.0
        %1270 = vmatprep.subr.mxu0 0.0
        %1271 = vmatpush1.msra.mxu0 0.0
        %1272 = vmatprep.subr.mxu0 0.0
        %1273 = vmatpush1.msra.mxu0 0.0
        %1274 = vmatprep.subr.mxu0 0.0
        %1275 = vmatpush1.msra.mxu0 0.0
        %1276 = vmatprep.subr.mxu0 0.0
        %1277 = vmatpush1.msra.mxu0 0.0
        %1278 = vmatprep.subr.mxu0 0.0
        %1279 = vmatpush1.msra.mxu0 0.0
        %1280 = vmatprep.subr.mxu0 0.0
        %1281 = vmatpush1.msra.mxu0 0.0
        %1282 = vmatprep.subr.mxu0 0.0
        %1283 = vmatpush1.msra.mxu0 0.0
        %1284 = vmatprep.subr.mxu0 0.0
        %1285 = vmatpush1.msra.mxu0 0.0
        %1286 = vmatprep.subr.mxu0 0.0
        %1287 = vmatpush1.msra.mxu0 0.0
        %1288 = vmatprep.subr.mxu0 0.0
        %1289 = vmatpush1.msra.mxu0 0.0
        %1290 = vmatprep.subr.mxu0 0.0
        %1291 = vmatpush1.msra.mxu0 0.0
        %1292 = vmatprep.subr.mxu0 0.0
        %1293 = vmatpush1.msra.mxu0 0.0
        %1294 = vmatprep.subr.mxu0 0.0
        %1295 = vmatpush1.msra.mxu0 0.0
        %1296 = vmatprep.subr.mxu0 0.0
        %1297 = vmatpush1.msra.mxu0 0.0
        %1298 = vmatprep.subr.mxu0 0.0
        %1299 = vmatpush1.msra.mxu0 0.0
        %1300 = vmatprep.subr.mxu0 0.0
        %1301 = vmatpush1.msra.mxu0 0.0
        %1302 = vmatprep.subr.mxu0 0.0
        %1303 = vmatpush1.msra.mxu0 0.0
        %1304 = vmatprep.subr.mxu0 0.0
        %1305 = vmatpush1.msra.mxu0 0.0
        %1306 = vmatprep.subr.mxu0 0.0
        %1307 = vmatpush1.msra.mxu0 0.0
        %1308 = vmatprep.mubr.f32.mxu0 0.0
        %1309 = vmatmul.mubr.f32.gmra.mrb[0].mxu0 %v1242
        %v1310 = vpop.f32.mrb[0].mxu0
        %v1311 = vadd.f32 0.0, %v1310
        %v1312 = vpop.f32.mrb[0].mxu0
        %1313 = vdwg.mxu0
        %v1314 = vadd.f32 %v1226, %v1311
        %v1315 = vadd.f32 %v1314, %v192
        %v1316 = vtanh.pop %v1315
        %v1318 = vsel %vm364, %v1316, 0
        %1320 = vmatprep.subr.mxu0 0.0
        %1321 = vmatpush1.msra.mxu0 %v180
        %1322 = vmatprep.subr.mxu0 0.0
        %1323 = vmatpush1.msra.mxu0 %v181
        %1324 = vmatprep.subr.mxu0 0.0
        %1325 = vmatpush1.msra.mxu0 %v182
        %1326 = vmatprep.subr.mxu0 0.0
        %1327 = vmatpush1.msra.mxu0 %v183
        %1328 = vmatprep.subr.mxu0 0.0
        %1329 = vmatpush1.msra.mxu0 %v184
        %1330 = vmatprep.subr.mxu0 0.0
        %1331 = vmatpush1.msra.mxu0 %v185
        %1332 = vmatprep.subr.mxu0 0.0
        %1333 = vmatpush1.msra.mxu0 %v186
        %1334 = vmatprep.subr.mxu0 0.0
        %1335 = vmatpush1.msra.mxu0 %v187
        %1336 = vmatprep.subr.mxu0 0.0
        %1337 = vmatpush1.msra.mxu0 0.0
        %1338 = vmatprep.subr.mxu0 0.0
        %1339 = vmatpush1.msra.mxu0 0.0
        %1340 = vmatprep.subr.mxu0 0.0
        %1341 = vmatpush1.msra.mxu0 0.0
        %1342 = vmatprep.subr.mxu0 0.0
        %1343 = vmatpush1.msra.mxu0 0.0
        %1344 = vmatprep.subr.mxu0 0.0
        %1345 = vmatpush1.msra.mxu0 0.0
        %1346 = vmatprep.subr.mxu0 0.0
        %1347 = vmatpush1.msra.mxu0 0.0
        %1348 = vmatprep.subr.mxu0 0.0
        %1349 = vmatpush1.msra.mxu0 0.0
        %1350 = vmatprep.subr.mxu0 0.0
        %1351 = vmatpush1.msra.mxu0 0.0
        %1352 = vmatprep.subr.mxu0 0.0
        %1353 = vmatpush1.msra.mxu0 0.0
        %1354 = vmatprep.subr.mxu0 0.0
        %1355 = vmatpush1.msra.mxu0 0.0
        %1356 = vmatprep.subr.mxu0 0.0
        %1357 = vmatpush1.msra.mxu0 0.0
        %1358 = vmatprep.subr.mxu0 0.0
        %1359 = vmatpush1.msra.mxu0 0.0
        %1360 = vmatprep.subr.mxu0 0.0
        %1361 = vmatpush1.msra.mxu0 0.0
        %1362 = vmatprep.subr.mxu0 0.0
        %1363 = vmatpush1.msra.mxu0 0.0
        %1364 = vmatprep.subr.mxu0 0.0
        %1365 = vmatpush1.msra.mxu0 0.0
        %1366 = vmatprep.subr.mxu0 0.0
        %1367 = vmatpush1.msra.mxu0 0.0
        %1368 = vmatprep.subr.mxu0 0.0
        %1369 = vmatpush1.msra.mxu0 0.0
        %1370 = vmatprep.subr.mxu0 0.0
        %1371 = vmatpush1.msra.mxu0 0.0
        %1372 = vmatprep.subr.mxu0 0.0
        %1373 = vmatpush1.msra.mxu0 0.0
        %1374 = vmatprep.subr.mxu0 0.0
        %1375 = vmatpush1.msra.mxu0 0.0
        %1376 = vmatprep.subr.mxu0 0.0
        %1377 = vmatpush1.msra.mxu0 0.0
        %1378 = vmatprep.subr.mxu0 0.0
        %1379 = vmatpush1.msra.mxu0 0.0
        %1380 = vmatprep.subr.mxu0 0.0
        %1381 = vmatpush1.msra.mxu0 0.0
        %1382 = vmatprep.subr.mxu0 0.0
        %1383 = vmatpush1.msra.mxu0 0.0
        %1384 = vmatprep.mubr.f32.mxu0 0.0
        %1385 = vmatmul.mubr.f32.gmra.mrb[0].mxu0 %v1318
        %v1386 = vpop.f32.mrb[0].mxu0
        %v1387 = vadd.f32 %v197, %v1386
        %v1388 = vpop.f32.mrb[0].mxu0
        %1389 = vdwg.mxu0
        %v1390 = vadd.f32 %v1387, %v1152
        %s1391 = scalar_lea.vmem %s173, 40 [#allocation7]
        %1392 = vst.msk [vmem:[%s1391] sm:$0xff] %vm199, %v1390
        %v1393 = vld [vmem:[#allocation5 + $0x75] sm:$0x1]
        %v1395 = vsel %vm199, %v1390, 0
        %1397 = vmatprep.subr.mxu0 0.0
        %1398 = vmatpush1.msra.mxu0 %v174
        %1399 = vmatprep.subr.mxu0 0.0
        %1400 = vmatpush1.msra.mxu0 %v175
        %1401 = vmatprep.subr.mxu0 0.0
        %1402 = vmatpush1.msra.mxu0 %v176
        %1403 = vmatprep.subr.mxu0 0.0
        %1404 = vmatpush1.msra.mxu0 %v177
        %1405 = vmatprep.subr.mxu0 0.0
        %1406 = vmatpush1.msra.mxu0 0.0
        %1407 = vmatprep.subr.mxu0 0.0
        %1408 = vmatpush1.msra.mxu0 0.0
        %1409 = vmatprep.subr.mxu0 0.0
        %1410 = vmatpush1.msra.mxu0 0.0
        %1411 = vmatprep.subr.mxu0 0.0
        %1412 = vmatpush1.msra.mxu0 0.0
        %1413 = vmatprep.subr.mxu0 0.0
        %1414 = vmatpush1.msra.mxu0 0.0
        %1415 = vmatprep.subr.mxu0 0.0
        %1416 = vmatpush1.msra.mxu0 0.0
        %1417 = vmatprep.subr.mxu0 0.0
        %1418 = vmatpush1.msra.mxu0 0.0
        %1419 = vmatprep.subr.mxu0 0.0
        %1420 = vmatpush1.msra.mxu0 0.0
        %1421 = vmatprep.subr.mxu0 0.0
        %1422 = vmatpush1.msra.mxu0 0.0
        %1423 = vmatprep.subr.mxu0 0.0
        %1424 = vmatpush1.msra.mxu0 0.0
        %1425 = vmatprep.subr.mxu0 0.0
        %1426 = vmatpush1.msra.mxu0 0.0
        %1427 = vmatprep.subr.mxu0 0.0
        %1428 = vmatpush1.msra.mxu0 0.0
        %1429 = vmatprep.subr.mxu0 0.0
        %1430 = vmatpush1.msra.mxu0 0.0
        %1431 = vmatprep.subr.mxu0 0.0
        %1432 = vmatpush1.msra.mxu0 0.0
        %1433 = vmatprep.subr.mxu0 0.0
        %1434 = vmatpush1.msra.mxu0 0.0
        %1435 = vmatprep.subr.mxu0 0.0
        %1436 = vmatpush1.msra.mxu0 0.0
        %1437 = vmatprep.subr.mxu0 0.0
        %1438 = vmatpush1.msra.mxu0 0.0
        %1439 = vmatprep.subr.mxu0 0.0
        %1440 = vmatpush1.msra.mxu0 0.0
        %1441 = vmatprep.subr.mxu0 0.0
        %1442 = vmatpush1.msra.mxu0 0.0
        %1443 = vmatprep.subr.mxu0 0.0
        %1444 = vmatpush1.msra.mxu0 0.0
        %1445 = vmatprep.subr.mxu0 0.0
        %1446 = vmatpush1.msra.mxu0 0.0
        %1447 = vmatprep.subr.mxu0 0.0
        %1448 = vmatpush1.msra.mxu0 0.0
        %1449 = vmatprep.subr.mxu0 0.0
        %1450 = vmatpush1.msra.mxu0 0.0
        %1451 = vmatprep.subr.mxu0 0.0
        %1452 = vmatpush1.msra.mxu0 0.0
        %1453 = vmatprep.subr.mxu0 0.0
        %1454 = vmatpush1.msra.mxu0 0.0
        %1455 = vmatprep.subr.mxu0 0.0
        %1456 = vmatpush1.msra.mxu0 0.0
        %1457 = vmatprep.subr.mxu0 0.0
        %1458 = vmatpush1.msra.mxu0 0.0
        %1459 = vmatprep.subr.mxu0 0.0
        %1460 = vmatpush1.msra.mxu0 0.0
        %1461 = vmatprep.mubr.f32.mxu0 0.0
        %1462 = vmatmul.mubr.f32.gmra.mrb[0].mxu0 %v1395
        %v1463 = vpop.f32.mrb[0].mxu0
        %v1464 = vadd.f32 0.0, %v1463
        %v1465 = vpop.f32.mrb[0].mxu0
        %1466 = vdwg.mxu0
        %v1467 = vlaneseq
        %v1468 = vshrl.u32 %v1467, 7
        %v1469 = vsub.s32 0, %v1468
        %v1470 = vrot.slane %v1393, %v1469
        %1472 = vrot.lane.b32.xlu0 %v1470, 64
        %v1473 = vpop.permute.xlu0 %1472
        %v1475 = vadd.f32 %v1464, %v1473
        %v1476 = vtanh.pop %v1475
        %1478 = vrot.lane.b32.xlu0 %v1476, 64
        %v1479 = vpop.permute.xlu0 %1478
        %v1480 = vsel %vm288, %v1479, 0
        %1482 = vmatprep.subr.mxu0 0.0
        %1483 = vmatpush1.msra.mxu0 %v178
        %1484 = vmatprep.subr.mxu0 0.0
        %1485 = vmatpush1.msra.mxu0 %v179
        %1486 = vmatprep.subr.mxu0 0.0
        %1487 = vmatpush1.msra.mxu0 0.0
        %1488 = vmatprep.subr.mxu0 0.0
        %1489 = vmatpush1.msra.mxu0 0.0
        %1490 = vmatprep.subr.mxu0 0.0
        %1491 = vmatpush1.msra.mxu0 0.0
        %1492 = vmatprep.subr.mxu0 0.0
        %1493 = vmatpush1.msra.mxu0 0.0
        %1494 = vmatprep.subr.mxu0 0.0
        %1495 = vmatpush1.msra.mxu0 0.0
        %1496 = vmatprep.subr.mxu0 0.0
        %1497 = vmatpush1.msra.mxu0 0.0
        %1498 = vmatprep.subr.mxu0 0.0
        %1499 = vmatpush1.msra.mxu0 0.0
        %1500 = vmatprep.subr.mxu0 0.0
        %1501 = vmatpush1.msra.mxu0 0.0
        %1502 = vmatprep.subr.mxu0 0.0
        %1503 = vmatpush1.msra.mxu0 0.0
        %1504 = vmatprep.subr.mxu0 0.0
        %1505 = vmatpush1.msra.mxu0 0.0
        %1506 = vmatprep.subr.mxu0 0.0
        %1507 = vmatpush1.msra.mxu0 0.0
        %1508 = vmatprep.subr.mxu0 0.0
        %1509 = vmatpush1.msra.mxu0 0.0
        %1510 = vmatprep.subr.mxu0 0.0
        %1511 = vmatpush1.msra.mxu0 0.0
        %1512 = vmatprep.subr.mxu0 0.0
        %1513 = vmatpush1.msra.mxu0 0.0
        %1514 = vmatprep.subr.mxu0 0.0
        %1515 = vmatpush1.msra.mxu0 0.0
        %1516 = vmatprep.subr.mxu0 0.0
        %1517 = vmatpush1.msra.mxu0 0.0
        %1518 = vmatprep.subr.mxu0 0.0
        %1519 = vmatpush1.msra.mxu0 0.0
        %1520 = vmatprep.subr.mxu0 0.0
        %1521 = vmatpush1.msra.mxu0 0.0
        %1522 = vmatprep.subr.mxu0 0.0
        %1523 = vmatpush1.msra.mxu0 0.0
        %1524 = vmatprep.subr.mxu0 0.0
        %1525 = vmatpush1.msra.mxu0 0.0
        %1526 = vmatprep.subr.mxu0 0.0
        %1527 = vmatpush1.msra.mxu0 0.0
        %1528 = vmatprep.subr.mxu0 0.0
        %1529 = vmatpush1.msra.mxu0 0.0
        %1530 = vmatprep.subr.mxu0 0.0
        %1531 = vmatpush1.msra.mxu0 0.0
        %1532 = vmatprep.subr.mxu0 0.0
        %1533 = vmatpush1.msra.mxu0 0.0
        %1534 = vmatprep.subr.mxu0 0.0
        %1535 = vmatpush1.msra.mxu0 0.0
        %1536 = vmatprep.subr.mxu0 0.0
        %1537 = vmatpush1.msra.mxu0 0.0
        %1538 = vmatprep.subr.mxu0 0.0
        %1539 = vmatpush1.msra.mxu0 0.0
        %1540 = vmatprep.subr.mxu0 0.0
        %1541 = vmatpush1.msra.mxu0 0.0
        %1542 = vmatprep.subr.mxu0 0.0
        %1543 = vmatpush1.msra.mxu0 0.0
        %1544 = vmatprep.subr.mxu0 0.0
        %1545 = vmatpush1.msra.mxu0 0.0
        %1546 = vmatprep.mubr.f32.mxu0 0.0
        %1547 = vmatmul.mubr.f32.gmra.mrb[0].mxu0 %v1480
        %v1548 = vpop.f32.mrb[0].mxu0
        %v1549 = vadd.f32 0.0, %v1548
        %v1550 = vpop.f32.mrb[0].mxu0
        %1551 = vdwg.mxu0
        %v1552 = vadd.f32 %v1464, %v1549
        %v1553 = vadd.f32 %v1552, %v192
        %v1554 = vtanh.pop %v1553
        %v1556 = vsel %vm364, %v1554, 0
        %1558 = vmatprep.subr.mxu0 0.0
        %1559 = vmatpush1.msra.mxu0 %v180
        %1560 = vmatprep.subr.mxu0 0.0
        %1561 = vmatpush1.msra.mxu0 %v181
        %1562 = vmatprep.subr.mxu0 0.0
        %1563 = vmatpush1.msra.mxu0 %v182
        %1564 = vmatprep.subr.mxu0 0.0
        %1565 = vmatpush1.msra.mxu0 %v183
        %1566 = vmatprep.subr.mxu0 0.0
        %1567 = vmatpush1.msra.mxu0 %v184
        %1568 = vmatprep.subr.mxu0 0.0
        %1569 = vmatpush1.msra.mxu0 %v185
        %1570 = vmatprep.subr.mxu0 0.0
        %1571 = vmatpush1.msra.mxu0 %v186
        %1572 = vmatprep.subr.mxu0 0.0
        %1573 = vmatpush1.msra.mxu0 %v187
        %1574 = vmatprep.subr.mxu0 0.0
        %1575 = vmatpush1.msra.mxu0 0.0
        %1576 = vmatprep.subr.mxu0 0.0
        %1577 = vmatpush1.msra.mxu0 0.0
        %1578 = vmatprep.subr.mxu0 0.0
        %1579 = vmatpush1.msra.mxu0 0.0
        %1580 = vmatprep.subr.mxu0 0.0
        %1581 = vmatpush1.msra.mxu0 0.0
        %1582 = vmatprep.subr.mxu0 0.0
        %1583 = vmatpush1.msra.mxu0 0.0
        %1584 = vmatprep.subr.mxu0 0.0
        %1585 = vmatpush1.msra.mxu0 0.0
        %1586 = vmatprep.subr.mxu0 0.0
        %1587 = vmatpush1.msra.mxu0 0.0
        %1588 = vmatprep.subr.mxu0 0.0
        %1589 = vmatpush1.msra.mxu0 0.0
        %1590 = vmatprep.subr.mxu0 0.0
        %1591 = vmatpush1.msra.mxu0 0.0
        %1592 = vmatprep.subr.mxu0 0.0
        %1593 = vmatpush1.msra.mxu0 0.0
        %1594 = vmatprep.subr.mxu0 0.0
        %1595 = vmatpush1.msra.mxu0 0.0
        %1596 = vmatprep.subr.mxu0 0.0
        %1597 = vmatpush1.msra.mxu0 0.0
        %1598 = vmatprep.subr.mxu0 0.0
        %1599 = vmatpush1.msra.mxu0 0.0
        %1600 = vmatprep.subr.mxu0 0.0
        %1601 = vmatpush1.msra.mxu0 0.0
        %1602 = vmatprep.subr.mxu0 0.0
        %1603 = vmatpush1.msra.mxu0 0.0
        %1604 = vmatprep.subr.mxu0 0.0
        %1605 = vmatpush1.msra.mxu0 0.0
        %1606 = vmatprep.subr.mxu0 0.0
        %1607 = vmatpush1.msra.mxu0 0.0
        %1608 = vmatprep.subr.mxu0 0.0
        %1609 = vmatpush1.msra.mxu0 0.0
        %1610 = vmatprep.subr.mxu0 0.0
        %1611 = vmatpush1.msra.mxu0 0.0
        %1612 = vmatprep.subr.mxu0 0.0
        %1613 = vmatpush1.msra.mxu0 0.0
        %1614 = vmatprep.subr.mxu0 0.0
        %1615 = vmatpush1.msra.mxu0 0.0
        %1616 = vmatprep.subr.mxu0 0.0
        %1617 = vmatpush1.msra.mxu0 0.0
        %1618 = vmatprep.subr.mxu0 0.0
        %1619 = vmatpush1.msra.mxu0 0.0
        %1620 = vmatprep.subr.mxu0 0.0
        %1621 = vmatpush1.msra.mxu0 0.0
        %1622 = vmatprep.mubr.f32.mxu0 0.0
        %1623 = vmatmul.mubr.f32.gmra.mrb[0].mxu0 %v1556
        %v1624 = vpop.f32.mrb[0].mxu0
        %v1625 = vadd.f32 %v197, %v1624
        %v1626 = vpop.f32.mrb[0].mxu0
        %1627 = vdwg.mxu0
        %v1628 = vadd.f32 %v1625, %v1390
        %s1629 = scalar_lea.vmem %s173, 48 [#allocation7]
        %1630 = vst.msk [vmem:[%s1629] sm:$0xff] %vm199, %v1628
        %v1631 = vld [vmem:[#allocation5 + $0x76] sm:$0x1]
        %v1633 = vsel %vm199, %v1628, 0
        %1635 = vmatprep.subr.mxu0 0.0
        %1636 = vmatpush1.msra.mxu0 %v174
        %1637 = vmatprep.subr.mxu0 0.0
        %1638 = vmatpush1.msra.mxu0 %v175
        %1639 = vmatprep.subr.mxu0 0.0
        %1640 = vmatpush1.msra.mxu0 %v176
        %1641 = vmatprep.subr.mxu0 0.0
        %1642 = vmatpush1.msra.mxu0 %v177
        %1643 = vmatprep.subr.mxu0 0.0
        %1644 = vmatpush1.msra.mxu0 0.0
        %1645 = vmatprep.subr.mxu0 0.0
        %1646 = vmatpush1.msra.mxu0 0.0
        %1647 = vmatprep.subr.mxu0 0.0
        %1648 = vmatpush1.msra.mxu0 0.0
        %1649 = vmatprep.subr.mxu0 0.0
        %1650 = vmatpush1.msra.mxu0 0.0
        %1651 = vmatprep.subr.mxu0 0.0
        %1652 = vmatpush1.msra.mxu0 0.0
        %1653 = vmatprep.subr.mxu0 0.0
        %1654 = vmatpush1.msra.mxu0 0.0
        %1655 = vmatprep.subr.mxu0 0.0
        %1656 = vmatpush1.msra.mxu0 0.0
        %1657 = vmatprep.subr.mxu0 0.0
        %1658 = vmatpush1.msra.mxu0 0.0
        %1659 = vmatprep.subr.mxu0 0.0
        %1660 = vmatpush1.msra.mxu0 0.0
        %1661 = vmatprep.subr.mxu0 0.0
        %1662 = vmatpush1.msra.mxu0 0.0
        %1663 = vmatprep.subr.mxu0 0.0
        %1664 = vmatpush1.msra.mxu0 0.0
        %1665 = vmatprep.subr.mxu0 0.0
        %1666 = vmatpush1.msra.mxu0 0.0
        %1667 = vmatprep.subr.mxu0 0.0
        %1668 = vmatpush1.msra.mxu0 0.0
        %1669 = vmatprep.subr.mxu0 0.0
        %1670 = vmatpush1.msra.mxu0 0.0
        %1671 = vmatprep.subr.mxu0 0.0
        %1672 = vmatpush1.msra.mxu0 0.0
        %1673 = vmatprep.subr.mxu0 0.0
        %1674 = vmatpush1.msra.mxu0 0.0
        %1675 = vmatprep.subr.mxu0 0.0
        %1676 = vmatpush1.msra.mxu0 0.0
        %1677 = vmatprep.subr.mxu0 0.0
        %1678 = vmatpush1.msra.mxu0 0.0
        %1679 = vmatprep.subr.mxu0 0.0
        %1680 = vmatpush1.msra.mxu0 0.0
        %1681 = vmatprep.subr.mxu0 0.0
        %1682 = vmatpush1.msra.mxu0 0.0
        %1683 = vmatprep.subr.mxu0 0.0
        %1684 = vmatpush1.msra.mxu0 0.0
        %1685 = vmatprep.subr.mxu0 0.0
        %1686 = vmatpush1.msra.mxu0 0.0
        %1687 = vmatprep.subr.mxu0 0.0
        %1688 = vmatpush1.msra.mxu0 0.0
        %1689 = vmatprep.subr.mxu0 0.0
        %1690 = vmatpush1.msra.mxu0 0.0
        %1691 = vmatprep.subr.mxu0 0.0
        %1692 = vmatpush1.msra.mxu0 0.0
        %1693 = vmatprep.subr.mxu0 0.0
        %1694 = vmatpush1.msra.mxu0 0.0
        %1695 = vmatprep.subr.mxu0 0.0
        %1696 = vmatpush1.msra.mxu0 0.0
        %1697 = vmatprep.subr.mxu0 0.0
        %1698 = vmatpush1.msra.mxu0 0.0
        %1699 = vmatprep.mubr.f32.mxu0 0.0
        %1700 = vmatmul.mubr.f32.gmra.mrb[0].mxu0 %v1633
        %v1701 = vpop.f32.mrb[0].mxu0
        %v1702 = vadd.f32 0.0, %v1701
        %v1703 = vpop.f32.mrb[0].mxu0
        %1704 = vdwg.mxu0
        %v1705 = vlaneseq
        %v1706 = vshrl.u32 %v1705, 7
        %v1707 = vsub.s32 0, %v1706
        %v1708 = vrot.slane %v1631, %v1707
        %1710 = vrot.lane.b32.xlu0 %v1708, 64
        %v1711 = vpop.permute.xlu0 %1710
        %v1713 = vadd.f32 %v1702, %v1711
        %v1714 = vtanh.pop %v1713
        %1716 = vrot.lane.b32.xlu0 %v1714, 64
        %v1717 = vpop.permute.xlu0 %1716
        %v1718 = vsel %vm288, %v1717, 0
        %1720 = vmatprep.subr.mxu0 0.0
        %1721 = vmatpush1.msra.mxu0 %v178
        %1722 = vmatprep.subr.mxu0 0.0
        %1723 = vmatpush1.msra.mxu0 %v179
        %1724 = vmatprep.subr.mxu0 0.0
        %1725 = vmatpush1.msra.mxu0 0.0
        %1726 = vmatprep.subr.mxu0 0.0
        %1727 = vmatpush1.msra.mxu0 0.0
        %1728 = vmatprep.subr.mxu0 0.0
        %1729 = vmatpush1.msra.mxu0 0.0
        %1730 = vmatprep.subr.mxu0 0.0
        %1731 = vmatpush1.msra.mxu0 0.0
        %1732 = vmatprep.subr.mxu0 0.0
        %1733 = vmatpush1.msra.mxu0 0.0
        %1734 = vmatprep.subr.mxu0 0.0
        %1735 = vmatpush1.msra.mxu0 0.0
        %1736 = vmatprep.subr.mxu0 0.0
        %1737 = vmatpush1.msra.mxu0 0.0
        %1738 = vmatprep.subr.mxu0 0.0
        %1739 = vmatpush1.msra.mxu0 0.0
        %1740 = vmatprep.subr.mxu0 0.0
        %1741 = vmatpush1.msra.mxu0 0.0
        %1742 = vmatprep.subr.mxu0 0.0
        %1743 = vmatpush1.msra.mxu0 0.0
        %1744 = vmatprep.subr.mxu0 0.0
        %1745 = vmatpush1.msra.mxu0 0.0
        %1746 = vmatprep.subr.mxu0 0.0
        %1747 = vmatpush1.msra.mxu0 0.0
        %1748 = vmatprep.subr.mxu0 0.0
        %1749 = vmatpush1.msra.mxu0 0.0
        %1750 = vmatprep.subr.mxu0 0.0
        %1751 = vmatpush1.msra.mxu0 0.0
        %1752 = vmatprep.subr.mxu0 0.0
        %1753 = vmatpush1.msra.mxu0 0.0
        %1754 = vmatprep.subr.mxu0 0.0
        %1755 = vmatpush1.msra.mxu0 0.0
        %1756 = vmatprep.subr.mxu0 0.0
        %1757 = vmatpush1.msra.mxu0 0.0
        %1758 = vmatprep.subr.mxu0 0.0
        %1759 = vmatpush1.msra.mxu0 0.0
        %1760 = vmatprep.subr.mxu0 0.0
        %1761 = vmatpush1.msra.mxu0 0.0
        %1762 = vmatprep.subr.mxu0 0.0
        %1763 = vmatpush1.msra.mxu0 0.0
        %1764 = vmatprep.subr.mxu0 0.0
        %1765 = vmatpush1.msra.mxu0 0.0
        %1766 = vmatprep.subr.mxu0 0.0
        %1767 = vmatpush1.msra.mxu0 0.0
        %1768 = vmatprep.subr.mxu0 0.0
        %1769 = vmatpush1.msra.mxu0 0.0
        %1770 = vmatprep.subr.mxu0 0.0
        %1771 = vmatpush1.msra.mxu0 0.0
        %1772 = vmatprep.subr.mxu0 0.0
        %1773 = vmatpush1.msra.mxu0 0.0
        %1774 = vmatprep.subr.mxu0 0.0
        %1775 = vmatpush1.msra.mxu0 0.0
        %1776 = vmatprep.subr.mxu0 0.0
        %1777 = vmatpush1.msra.mxu0 0.0
        %1778 = vmatprep.subr.mxu0 0.0
        %1779 = vmatpush1.msra.mxu0 0.0
        %1780 = vmatprep.subr.mxu0 0.0
        %1781 = vmatpush1.msra.mxu0 0.0
        %1782 = vmatprep.subr.mxu0 0.0
        %1783 = vmatpush1.msra.mxu0 0.0
        %1784 = vmatprep.mubr.f32.mxu0 0.0
        %1785 = vmatmul.mubr.f32.gmra.mrb[0].mxu0 %v1718
        %v1786 = vpop.f32.mrb[0].mxu0
        %v1787 = vadd.f32 0.0, %v1786
        %v1788 = vpop.f32.mrb[0].mxu0
        %1789 = vdwg.mxu0
        %v1790 = vadd.f32 %v1702, %v1787
        %v1791 = vadd.f32 %v1790, %v192
        %v1792 = vtanh.pop %v1791
        %v1794 = vsel %vm364, %v1792, 0
        %1796 = vmatprep.subr.mxu0 0.0
        %1797 = vmatpush1.msra.mxu0 %v180
        %1798 = vmatprep.subr.mxu0 0.0
        %1799 = vmatpush1.msra.mxu0 %v181
        %1800 = vmatprep.subr.mxu0 0.0
        %1801 = vmatpush1.msra.mxu0 %v182
        %1802 = vmatprep.subr.mxu0 0.0
        %1803 = vmatpush1.msra.mxu0 %v183
        %1804 = vmatprep.subr.mxu0 0.0
        %1805 = vmatpush1.msra.mxu0 %v184
        %1806 = vmatprep.subr.mxu0 0.0
        %1807 = vmatpush1.msra.mxu0 %v185
        %1808 = vmatprep.subr.mxu0 0.0
        %1809 = vmatpush1.msra.mxu0 %v186
        %1810 = vmatprep.subr.mxu0 0.0
        %1811 = vmatpush1.msra.mxu0 %v187
        %1812 = vmatprep.subr.mxu0 0.0
        %1813 = vmatpush1.msra.mxu0 0.0
        %1814 = vmatprep.subr.mxu0 0.0
        %1815 = vmatpush1.msra.mxu0 0.0
        %1816 = vmatprep.subr.mxu0 0.0
        %1817 = vmatpush1.msra.mxu0 0.0
        %1818 = vmatprep.subr.mxu0 0.0
        %1819 = vmatpush1.msra.mxu0 0.0
        %1820 = vmatprep.subr.mxu0 0.0
        %1821 = vmatpush1.msra.mxu0 0.0
        %1822 = vmatprep.subr.mxu0 0.0
        %1823 = vmatpush1.msra.mxu0 0.0
        %1824 = vmatprep.subr.mxu0 0.0
        %1825 = vmatpush1.msra.mxu0 0.0
        %1826 = vmatprep.subr.mxu0 0.0
        %1827 = vmatpush1.msra.mxu0 0.0
        %1828 = vmatprep.subr.mxu0 0.0
        %1829 = vmatpush1.msra.mxu0 0.0
        %1830 = vmatprep.subr.mxu0 0.0
        %1831 = vmatpush1.msra.mxu0 0.0
        %1832 = vmatprep.subr.mxu0 0.0
        %1833 = vmatpush1.msra.mxu0 0.0
        %1834 = vmatprep.subr.mxu0 0.0
        %1835 = vmatpush1.msra.mxu0 0.0
        %1836 = vmatprep.subr.mxu0 0.0
        %1837 = vmatpush1.msra.mxu0 0.0
        %1838 = vmatprep.subr.mxu0 0.0
        %1839 = vmatpush1.msra.mxu0 0.0
        %1840 = vmatprep.subr.mxu0 0.0
        %1841 = vmatpush1.msra.mxu0 0.0
        %1842 = vmatprep.subr.mxu0 0.0
        %1843 = vmatpush1.msra.mxu0 0.0
        %1844 = vmatprep.subr.mxu0 0.0
        %1845 = vmatpush1.msra.mxu0 0.0
        %1846 = vmatprep.subr.mxu0 0.0
        %1847 = vmatpush1.msra.mxu0 0.0
        %1848 = vmatprep.subr.mxu0 0.0
        %1849 = vmatpush1.msra.mxu0 0.0
        %1850 = vmatprep.subr.mxu0 0.0
        %1851 = vmatpush1.msra.mxu0 0.0
        %1852 = vmatprep.subr.mxu0 0.0
        %1853 = vmatpush1.msra.mxu0 0.0
        %1854 = vmatprep.subr.mxu0 0.0
        %1855 = vmatpush1.msra.mxu0 0.0
        %1856 = vmatprep.subr.mxu0 0.0
        %1857 = vmatpush1.msra.mxu0 0.0
        %1858 = vmatprep.subr.mxu0 0.0
        %1859 = vmatpush1.msra.mxu0 0.0
        %1860 = vmatprep.mubr.f32.mxu0 0.0
        %1861 = vmatmul.mubr.f32.gmra.mrb[0].mxu0 %v1794
        %v1862 = vpop.f32.mrb[0].mxu0
        %v1863 = vadd.f32 %v197, %v1862
        %v1864 = vpop.f32.mrb[0].mxu0
        %1865 = vdwg.mxu0
        %v1866 = vadd.f32 %v1863, %v1628
        %s1867 = scalar_lea.vmem %s173, 56 [#allocation7]
        %1868 = vst.msk [vmem:[%s1867] sm:$0xff] %vm199, %v1866
        %s1869 = sand.u32 %s75, 1
        %s1870 = scalar_lea.sflag [#allocation4], %s1869
        %s1871 = sand.u32 %s75, 1
        %s1872 = smul.addr %s1871, 64
        %s1873 = scalar_lea.vmem [#allocation7], %s1872
        // Predicated region
        $region37: #{tpu_custom_call.1} parent=27 // pred_check
          %p1874 = pneg %p85
        $region38: #{tpu_custom_call.1} parent=27 // pred_check_branch
          %1876 = sbr.rel (%p1874) target = $region40
        $region39: #{tpu_custom_call.1} parent=27 // pred_region
          %s1878 = ssub.s32 1024, 1024
          %1879 = vsyncadd %s1870, %s1878
          %s1880 = smul.addr %s20, 128
          %s1881 = scalar_lea.hbm %s2, %s1880
          %s1882 = sshll.u32 %s1873, 4
          %s1883 = int_to_ptr.vmem [resolvable:$true] %s1882
          %1888 = dma.vmem_to_hbm [thread:$0]  %s1883, 1024, %s1881, %s1870, 128, 256, 8
        $region40: #{tpu_custom_call.1} parent=27 // pred_fallthru
          _
      $region28: #{tpu_custom_call.1} parent=5 // pred_fallthru
        _
      %p1889 = scmp.le.s32.totalorder 2, %s15
      // Predicated region
      $region41: #{tpu_custom_call.1} parent=5 // pred_check
        %p1890 = pneg %p1889
      $region42: #{tpu_custom_call.1} parent=5 // pred_check_branch
        %1892 = sbr.rel (%p1890) target = $region44
      $region43: #{tpu_custom_call.1} parent=5 // pred_region
        %s1893 = ssub.s32 %s15, 2
        // Predicated region
        $region45: #{tpu_custom_call.1} parent=43 // pred_check
          %p1894 = pneg %p91
        $region46: #{tpu_custom_call.1} parent=43 // pred_check_branch
          %1896 = sbr.rel (%p1894) target = $region48
        $region47: #{tpu_custom_call.1} parent=43 // pred_region
          %s1897 = sand.u32 %s76, 1
          %s1898 = scalar_lea.sflag [#allocation4], %s1897
          %s1899 = sand.u32 %s76, 1
          %s1900 = smul.addr %s1899, 64
          %s1901 = scalar_lea.vmem [#allocation7], %s1900
          %1902 = dma.done %s1898, 1024
        $region48: #{tpu_custom_call.1} parent=43 // pred_fallthru
          _
      $region44: #{tpu_custom_call.1} parent=5 // pred_fallthru
        _
    $region6: #{tpu_custom_call.1} parent=1 // loop_footer
      %s19 = sadd.s32 1, %s15
    $region7: #{tpu_custom_call.1} parent=1 // loop_footer_branch
      %14 = sbr.rel target = $region3
    $region8: #{tpu_custom_call.1} parent=1 // loop_exit
      _
    %1903 = vsyncpa [#allocation3], 1
    %s1904 = scalar_lea.sflag [#allocation3], 1
    %1905 = vsyncpa %s1904, 1
    %1906 = vsyncpa [#allocation6], 1
    %1907 = vsyncpa [#allocation4], 1
    %s1908 = scalar_lea.sflag [#allocation4], 1
    %1909 = vsyncpa %s1908, 1

</llo_original>
